<compile_context>
chip_gen: v7x
topology: tpu7x:2x2x1
jax: 0.10.0
libtpu: 0.0.40
codegen_flags: <defaults>
</compile_context>

<pallas_src>
import functools
import math

import jax
import jax.numpy as jnp
from jax.experimental import pallas as pl
from jax.experimental.pallas import tpu as pltpu

HIDDEN = 32            # hidden_size
VOCAB = 31             # len('abcdefghijklmnopqrstuvwxyz .,!?')
VOCAB_PAD = 128        # lane-dense padded vocab
FF = 2048              # nn.TransformerEncoderLayer default dim_feedforward
EPS = 1e-5             # LayerNorm default eps
SCALE = math.sqrt(HIDDEN)
EMB_ROWS = 32          # vocab rows padded to a sublane multiple
MAX_ROWS_PER_BLOCK = 512   # cap fused row block: (R,R) scores + (R,FF) h must fit VMEM

# ---- packed parameter slab layout: (SLAB_ROWS, 128) f32 ----
ROW_EMB = 0                         # [0:32,   0:32]   embedding table * sqrt(H) (padded)
ROW_INW = ROW_EMB + EMB_ROWS        # [32:64,  0:96]   in_proj W^T (q cols pre-scaled)
ROW_OUTW = ROW_INW + HIDDEN         # [64:96,  0:32]   out_proj W^T
ROW_HEADW = ROW_OUTW + HIDDEN       # [96:128, 0:128]  lm_head W^T (cols 31:128 zero)
ROW_INB = ROW_HEADW + HIDDEN        # 128              in_proj bias (96, q part pre-scaled)
ROW_OUTB = ROW_INB + 1              # 129              out_proj bias (32)
ROW_LN1W = ROW_OUTB + 1             # 130
ROW_LN1B = ROW_LN1W + 1             # 131
ROW_LN2W = ROW_LN1B + 1             # 132
ROW_LN2B = ROW_LN2W + 1             # 133
ROW_HEADB = ROW_LN2B + 1            # 134              lm_head bias (padded to 128)
ROW_L2B = ROW_HEADB + 1             # 135              linear2 bias (32)
SLAB_ROWS = 136                     # multiple of 8


def _layernorm(x, w, b):
    mu = jnp.mean(x, axis=-1, keepdims=True)
    var = jnp.mean((x - mu) ** 2, axis=-1, keepdims=True)
    return (x - mu) * jax.lax.rsqrt(var + EPS) * w + b


def tinygpt_kernel(tok_ref, sid_ref, slab_ref, l1w_ref, l1b_ref, l2w_ref, o_ref,
                   *, seqs_per_block):
    rows = tok_ref.shape[0]                                  # rows handled in one step

    # --- embedding gather fused as one-hot matmul; sqrt(H) folded into the table ---
    tok = tok_ref[...]                                                      # (R, 1) i32
    cols = jax.lax.broadcasted_iota(jnp.int32, (rows, EMB_ROWS), 1)
    onehot = (tok == cols).astype(jnp.float32)                              # (R, 32)
    emb = slab_ref[ROW_EMB:ROW_EMB + EMB_ROWS, 0:HIDDEN]                    # (32, H)
    x = jnp.dot(onehot, emb, preferred_element_type=jnp.float32)            # (R, H)

    # --- self-attention (nhead=1); 1/sqrt(H) folded into the q projection ---
    inw = slab_ref[ROW_INW:ROW_INW + HIDDEN, 0:3 * HIDDEN]                  # (H, 3H)
    inb = slab_ref[ROW_INB:ROW_INB + 1, 0:3 * HIDDEN]                       # (1, 3H)
    qkv = jnp.dot(x, inw, preferred_element_type=jnp.float32) + inb         # (R, 3H)
    q = qkv[:, 0:HIDDEN]
    k = qkv[:, HIDDEN:2 * HIDDEN]
    v = qkv[:, 2 * HIDDEN:3 * HIDDEN]

    scores = jax.lax.dot_general(q, k, (((1,), (1,)), ((), ())),
                                 preferred_element_type=jnp.float32)        # (R, R)

    if seqs_per_block > 1:
        # Block-diagonal mask generated in-kernel (no (SB,SB) HBM input): sequence-id
        # one-hot outer product -> 1.0 within a sequence, 0.0 across sequences.
        sid = sid_ref[...]                                                  # (R, 1) i32
        oh_w = max(seqs_per_block, 8)
        scols = jax.lax.broadcasted_iota(jnp.int32, (rows, oh_w), 1)
        seq_oh = (sid == scols).astype(jnp.float32)                         # (R, oh_w)
        same = jax.lax.dot_general(seq_oh, seq_oh, (((1,), (1,)), ((), ())),
                                   preferred_element_type=jnp.float32)      # (R, R)
        scores = jnp.where(same > 0.5, scores, -1e30)

    scores = scores - jnp.max(scores, axis=-1, keepdims=True)
    p = jnp.exp(scores)
    attn = p * pl.reciprocal(jnp.sum(p, axis=-1, keepdims=True), approx=True)
    ctx = jnp.dot(attn, v, preferred_element_type=jnp.float32)              # (R, H)

    outw = slab_ref[ROW_OUTW:ROW_OUTW + HIDDEN, 0:HIDDEN]                   # (H, H)
    outb = slab_ref[ROW_OUTB:ROW_OUTB + 1, 0:HIDDEN]                        # (1, H)
    attn_out = jnp.dot(ctx, outw, preferred_element_type=jnp.float32) + outb

    y = _layernorm(x + attn_out,
                   slab_ref[ROW_LN1W:ROW_LN1W + 1, 0:HIDDEN],
                   slab_ref[ROW_LN1B:ROW_LN1B + 1, 0:HIDDEN])               # (R, H)

    # --- feed-forward (the FLOP-heavy part): bf16 MXU operands, f32 accumulate,
    #     all elementwise stays f32 (v5e has no bf16 VPU/EUP) ---
    h = jnp.dot(y.astype(jnp.bfloat16), l1w_ref[...],
                preferred_element_type=jnp.float32) + l1b_ref[...]          # (R, FF)
    h = jnp.maximum(h, 0.0)                                                 # relu
    # linear2 weight kept lane-dense in native (H, FF) layout; contract the FF (lane) dims.
    ff = jax.lax.dot_general(h.astype(jnp.bfloat16), l2w_ref[...],
                             (((1,), (1,)), ((), ())),
                             preferred_element_type=jnp.float32)            # (R, H)
    ff = ff + slab_ref[ROW_L2B:ROW_L2B + 1, 0:HIDDEN]

    z = _layernorm(y + ff,
                   slab_ref[ROW_LN2W:ROW_LN2W + 1, 0:HIDDEN],
                   slab_ref[ROW_LN2B:ROW_LN2B + 1, 0:HIDDEN])               # (R, H)

    # --- lm head, lane-dense (vocab padded to 128) -> unmasked stores ---
    headw = slab_ref[ROW_HEADW:ROW_HEADW + HIDDEN, :]                       # (H, 128)
    headb = slab_ref[ROW_HEADB:ROW_HEADB + 1, :]                            # (1, 128)
    o_ref[...] = jnp.dot(z, headw, preferred_element_type=jnp.float32) + headb


def init_params(key):
    ks = jax.random.split(key, 11)

    def n(k, shape, scale=0.02):
        return jax.random.normal(k, shape, jnp.float32) * scale

    # PyTorch-native layouts (Linear: (out, in)); repacked once in pack_params.
    return {
        "emb":    n(ks[0], (VOCAB, HIDDEN), 1.0),
        "in_w":   n(ks[1], (3 * HIDDEN, HIDDEN)),
        "in_b":   n(ks[2], (3 * HIDDEN,)),
        "out_w":  n(ks[3], (HIDDEN, HIDDEN)),
        "out_b":  n(ks[4], (HIDDEN,)),
        "ln1_w":  jnp.ones((HIDDEN,), jnp.float32),
        "ln1_b":  jnp.zeros((HIDDEN,), jnp.float32),
        "l1_w":   n(ks[5], (FF, HIDDEN)),
        "l1_b":   n(ks[6], (FF,)),
        "l2_w":   n(ks[7], (HIDDEN, FF)),
        "l2_b":   n(ks[8], (HIDDEN,)),
        "ln2_w":  jnp.ones((HIDDEN,), jnp.float32),
        "ln2_b":  jnp.zeros((HIDDEN,), jnp.float32),
        "head_w": n(ks[9], (VOCAB, HIDDEN)),
        "head_b": n(ks[10], (VOCAB,)),
    }


def pack_params(params):
    """Pack all small tensors into one (8,128)-aligned f32 slab + bf16 FF weights.

    Runs ONCE at load time (hoisted out of the per-call path).  Constant scales are
    folded here: embedding rows * sqrt(H); q columns of in_proj W^T / in_b * 1/sqrt(H).
    """
    slab = jnp.zeros((SLAB_ROWS, VOCAB_PAD), jnp.float32)
    slab = slab.at[ROW_EMB:ROW_EMB + VOCAB, 0:HIDDEN].set(params["emb"] * SCALE)

    in_w_t = params["in_w"].T                                   # (H, 3H)
    in_w_t = in_w_t.at[:, 0:HIDDEN].multiply(1.0 / SCALE)       # fold 1/sqrt(H) into q
    in_b = params["in_b"].at[0:HIDDEN].multiply(1.0 / SCALE)
    slab = slab.at[ROW_INW:ROW_INW + HIDDEN, 0:3 * HIDDEN].set(in_w_t)
    slab = slab.at[ROW_INB, 0:3 * HIDDEN].set(in_b)

    slab = slab.at[ROW_OUTW:ROW_OUTW + HIDDEN, 0:HIDDEN].set(params["out_w"].T)
    slab = slab.at[ROW_OUTB, 0:HIDDEN].set(params["out_b"])
    slab = slab.at[ROW_LN1W, 0:HIDDEN].set(params["ln1_w"])
    slab = slab.at[ROW_LN1B, 0:HIDDEN].set(params["ln1_b"])
    slab = slab.at[ROW_LN2W, 0:HIDDEN].set(params["ln2_w"])
    slab = slab.at[ROW_LN2B, 0:HIDDEN].set(params["ln2_b"])
    slab = slab.at[ROW_HEADW:ROW_HEADW + HIDDEN, 0:VOCAB].set(params["head_w"].T)
    slab = slab.at[ROW_HEADB, 0:VOCAB].set(params["head_b"])
    slab = slab.at[ROW_L2B, 0:HIDDEN].set(params["l2_b"])

    l1w = params["l1_w"].T.astype(jnp.bfloat16)             # (H, FF), lane-dense
    l1b = params["l1_b"].reshape(1, FF).astype(jnp.float32)
    l2w = params["l2_w"].astype(jnp.bfloat16)               # (H, FF) native, lane-dense
    return slab, l1w, l1b, l2w


@functools.lru_cache(maxsize=1)
def _num_tensorcores():
    """TensorCores per chip: v4 / v5p / v7x have 2, v5e / v6e have 1."""
    try:
        kind = jax.devices()[0].device_kind.lower()
    except Exception:
        return 1
    return 2 if ("v7" in kind or "v4" in kind or "v5p" in kind) else 1


def _num_row_blocks(B, S):
    """Split the B*S rows into blocks of whole sequences: one block per TensorCore on
    2-TC chips, plus a cap on rows/block so (R,R)/(R,FF) intermediates stay in VMEM."""
    nblk = 1
    nc = _num_tensorcores()
    if nc > 1 and B % nc == 0 and (B // nc) * S % 8 == 0:
        nblk = nc
    while ((B // nblk) * S > MAX_ROWS_PER_BLOCK and B % (nblk * 2) == 0
           and (B // (nblk * 2)) * S % 8 == 0):
        nblk *= 2
    return nblk


def tinygpt_forward(tokens, packed):
    """tokens: (S, B) int32, packed = pack_params(params) -> logits (S, B, VOCAB) f32."""
    slab, l1w, l1b, l2w = packed
    S, B = tokens.shape
    SB = S * B
    nblk = _num_row_blocks(B, S)
    R = SB // nblk                       # rows per grid step (whole sequences)
    seqs_per_block = B // nblk

    # Batch-major rows (row = b*S + s) so each grid block holds whole sequences.
    tok = jnp.transpose(tokens).reshape(SB, 1).astype(jnp.int32)
    # Block-local sequence id per row (only read in-kernel when seqs_per_block > 1).
    sid = ((jnp.arange(SB, dtype=jnp.int32) // S) % max(seqs_per_block, 1)).reshape(SB, 1)

    kernel = functools.partial(tinygpt_kernel, seqs_per_block=seqs_per_block)

    out = pl.pallas_call(
        kernel,
        out_shape=jax.ShapeDtypeStruct((SB, VOCAB_PAD), jnp.float32),
        grid_spec=pltpu.PrefetchScalarGridSpec(
            num_scalar_prefetch=0,
            grid=(nblk,),                               # whole sequences per block
            in_specs=[
                pl.BlockSpec((R, 1), lambda g: (g, 0)),                 # token ids
                pl.BlockSpec((R, 1), lambda g: (g, 0)),                 # sequence ids
                pl.BlockSpec((SLAB_ROWS, VOCAB_PAD), lambda g: (0, 0)), # packed params
                pl.BlockSpec((HIDDEN, FF), lambda g: (0, 0)),           # linear1 W^T (bf16)
                pl.BlockSpec((1, FF), lambda g: (0, 0)),                # linear1 bias (f32)
                pl.BlockSpec((HIDDEN, FF), lambda g: (0, 0)),           # linear2 W (bf16)
            ],
            out_specs=pl.BlockSpec((R, VOCAB_PAD), lambda g: (g, 0)),
        ),
        compiler_params=pltpu.CompilerParams(
            dimension_semantics=("parallel",),          # splits across TCs on v4/v5p/v7x
            vmem_limit_bytes=32 * 1024 * 1024,
        ),
    )(tok, sid, slab, l1w, l1b, l2w)

    logits = out.reshape(B, S, VOCAB_PAD)[:, :, :VOCAB]   # cheap slice
    return jnp.swapaxes(logits, 0, 1)                      # (S, B, VOCAB)


def tinygpt_reference(tokens, params):
    """Pure-JAX f32 reference of the PyTorch forward (eval mode)."""
    x = jnp.take(params["emb"], tokens, axis=0) * SCALE                     # (S, B, H)
    qkv = jnp.einsum("sbh,oh->sbo", x, params["in_w"]) + params["in_b"]
    q = qkv[..., 0:HIDDEN] / math.sqrt(HIDDEN)
    k = qkv[..., HIDDEN:2 * HIDDEN]
    v = qkv[..., 2 * HIDDEN:3 * HIDDEN]
    scores = jnp.einsum("sbh,tbh->bst", q, k)
    attn = jax.nn.softmax(scores, axis=-1)
    ctx = jnp.einsum("bst,tbh->sbh", attn, v)
    a = jnp.einsum("sbh,oh->sbo", ctx, params["out_w"]) + params["out_b"]
    y = _layernorm(x + a, params["ln1_w"], params["ln1_b"])
    h = jax.nn.relu(jnp.einsum("sbh,fh->sbf", y, params["l1_w"]) + params["l1_b"])
    ff = jnp.einsum("sbf,hf->sbh", h, params["l2_w"]) + params["l2_b"]
    z = _layernorm(y + ff, params["ln2_w"], params["ln2_b"])
    return jnp.einsum("sbh,vh->sbv", z, params["head_w"]) + params["head_b"]


if __name__ == "__main__":
    key = jax.random.PRNGKey(0)
    pkey, tkey = jax.random.split(key)
    params = init_params(pkey)
    packed = pack_params(params)        # packed ONCE at load time, not per call

    S, B = 8, 2
    tokens = jax.random.randint(tkey, (S, B), 0, VOCAB, dtype=jnp.int32)

    fwd = jax.jit(tinygpt_forward)
    logits = fwd(tokens, packed)
    jax.block_until_ready(logits)
    assert logits.shape == (S, B, VOCAB), logits.shape
    assert logits.dtype == jnp.float32

    ref = tinygpt_reference(tokens, params)
    err = float(jnp.max(jnp.abs(logits - ref)))
    assert err < 1e-2, f"max |kernel - reference| = {err}"
    print("KERNEL_OK")
</pallas_src>

<mosaic_0001>
module attributes {stable_mosaic.version = 11 : i64} {
  func.func @tinygpt_kernel(%arg0: i32, %arg1: memref<16x1xi32, #tpu.memory_space<vmem>>, %arg2: memref<16x1xi32, #tpu.memory_space<vmem>>, %arg3: memref<136x128xf32, #tpu.memory_space<vmem>>, %arg4: memref<32x2048xbf16, #tpu.memory_space<vmem>>, %arg5: memref<1x2048xf32, #tpu.memory_space<vmem>>, %arg6: memref<32x2048xbf16, #tpu.memory_space<vmem>>, %arg7: memref<16x128xf32, #tpu.memory_space<vmem>>) attributes {dimension_semantics = [#tpu.dimension_semantics<parallel>], iteration_bounds = array<i64: 1>, scalar_prefetch = 0 : i64, scratch_operands = 0 : i64, tpu.core_type = #tpu.core_type<tc>, window_params = [{transform_indices = @transform_0, window_bounds = array<i64: 16, 1>}, {transform_indices = @transform_1, window_bounds = array<i64: 16, 1>}, {pipeline_mode = #tpu.pipeline_mode<synchronous>, transform_indices = @transform_2, window_bounds = array<i64: 136, 128>}, {pipeline_mode = #tpu.pipeline_mode<synchronous>, transform_indices = @transform_3, window_bounds = array<i64: 32, 2048>}, {pipeline_mode = #tpu.pipeline_mode<synchronous>, transform_indices = @transform_4, window_bounds = array<i64: 1, 2048>}, {pipeline_mode = #tpu.pipeline_mode<synchronous>, transform_indices = @transform_5, window_bounds = array<i64: 32, 2048>}, {transform_indices = @transform_6, window_bounds = array<i64: 16, 128>}]} {
    %c0 = arith.constant 0 : index
    %c0_0 = arith.constant 0 : index
    %0 = vector.load %arg1[%c0, %c0_0] : memref<16x1xi32, #tpu.memory_space<vmem>>, vector<16x1xi32>
    %1 = tpu.iota {dimensions = array<i32: 1>} : vector<16x32xi32>
    %2 = vector.broadcast %0 : vector<16x1xi32> to vector<16x32xi32>
    %3 = arith.cmpi eq, %2, %1 : vector<16x32xi32>
    %4 = arith.extui %3 : vector<16x32xi1> to vector<16x32xi32>
    %5 = arith.sitofp %4 : vector<16x32xi32> to vector<16x32xf32>
    %c0_1 = arith.constant 0 : index
    %c0_2 = arith.constant 0 : index
    %6 = vector.load %arg3[%c0_1, %c0_2] : memref<136x128xf32, #tpu.memory_space<vmem>>, vector<32x32xf32>
    %cst = arith.constant dense<0.000000e+00> : vector<16x32xf32>
    %7 = tpu.matmul %5, %6, %cst {dimension_numbers = #tpu.dot_dimension_numbers<[1], [0], [0], [1], [0, 0, 1, 1], [], []>} : vector<16x32xf32>, vector<32x32xf32>, vector<16x32xf32> -> vector<16x32xf32>
    %c32 = arith.constant 32 : index
    %c0_3 = arith.constant 0 : index
    %8 = vector.load %arg3[%c32, %c0_3] : memref<136x128xf32, #tpu.memory_space<vmem>>, vector<32x96xf32>
    %c128 = arith.constant 128 : index
    %c0_4 = arith.constant 0 : index
    %9 = vector.load %arg3[%c128, %c0_4] : memref<136x128xf32, #tpu.memory_space<vmem>>, vector<1x96xf32>
    %cst_5 = arith.constant dense<0.000000e+00> : vector<16x96xf32>
    %10 = tpu.matmul %7, %8, %cst_5 {dimension_numbers = #tpu.dot_dimension_numbers<[1], [0], [0], [1], [0, 0, 1, 1], [], []>} : vector<16x32xf32>, vector<32x96xf32>, vector<16x96xf32> -> vector<16x96xf32>
    %11 = vector.broadcast %9 : vector<1x96xf32> to vector<16x96xf32>
    %12 = arith.addf %10, %11 : vector<16x96xf32>
    %13 = vector.extract_strided_slice %12 {offsets = [0, 0], sizes = [16, 32], strides = [1, 1]} : vector<16x96xf32> to vector<16x32xf32>
    %14 = vector.extract_strided_slice %12 {offsets = [0, 32], sizes = [16, 32], strides = [1, 1]} : vector<16x96xf32> to vector<16x32xf32>
    %15 = vector.extract_strided_slice %12 {offsets = [0, 64], sizes = [16, 32], strides = [1, 1]} : vector<16x96xf32> to vector<16x32xf32>
    %cst_6 = arith.constant dense<0.000000e+00> : vector<16x16xf32>
    %16 = tpu.matmul %13, %14, %cst_6 {dimension_numbers = #tpu.dot_dimension_numbers<[1], [1], [0], [0], [0, 0, 1, 0], [], []>} : vector<16x32xf32>, vector<16x32xf32>, vector<16x16xf32> -> vector<16x16xf32>
    %c0_7 = arith.constant 0 : index
    %c0_8 = arith.constant 0 : index
    %17 = vector.load %arg2[%c0_7, %c0_8] : memref<16x1xi32, #tpu.memory_space<vmem>>, vector<16x1xi32>
    %18 = tpu.iota {dimensions = array<i32: 1>} : vector<16x8xi32>
    %19 = vector.broadcast %17 : vector<16x1xi32> to vector<16x8xi32>
    %20 = arith.cmpi eq, %19, %18 : vector<16x8xi32>
    %21 = arith.extui %20 : vector<16x8xi1> to vector<16x8xi32>
    %22 = arith.sitofp %21 : vector<16x8xi32> to vector<16x8xf32>
    %cst_9 = arith.constant dense<0.000000e+00> : vector<16x16xf32>
    %23 = tpu.matmul %22, %22, %cst_9 {dimension_numbers = #tpu.dot_dimension_numbers<[1], [1], [0], [0], [0, 0, 1, 0], [], []>} : vector<16x8xf32>, vector<16x8xf32>, vector<16x16xf32> -> vector<16x16xf32>
    %cst_10 = arith.constant 5.000000e-01 : f32
    %24 = vector.broadcast %cst_10 : f32 to vector<16x16xf32>
    %25 = arith.cmpf ogt, %23, %24 : vector<16x16xf32>
    %cst_11 = arith.constant -1.000000e+30 : f32
    %26 = vector.broadcast %cst_11 : f32 to vector<16x16xf32>
    %27 = arith.select %25, %16, %26 : vector<16x16xi1>, vector<16x16xf32>
    %cst_12 = arith.constant dense<0xFF800000> : vector<16xf32>
    %28 = vector.multi_reduction <maximumf>, %27, %cst_12 [1] : vector<16x16xf32> to vector<16xf32>
    %29 = vector.shape_cast %28 : vector<16xf32> to vector<16x1xf32>
    %30 = vector.broadcast %29 : vector<16x1xf32> to vector<16x16xf32>
    %31 = arith.subf %27, %30 : vector<16x16xf32>
    %32 = math.exp %31 : vector<16x16xf32>
    %cst_13 = arith.constant dense<0.000000e+00> : vector<16xf32>
    %33 = vector.multi_reduction <add>, %32, %cst_13 [1] : vector<16x16xf32> to vector<16xf32>
    %34 = vector.shape_cast %33 : vector<16xf32> to vector<16x1xf32>
    %35 = tpu.reciprocal %34 {approx = true} : vector<16x1xf32> -> vector<16x1xf32>
    %36 = vector.broadcast %35 : vector<16x1xf32> to vector<16x16xf32>
    %37 = arith.mulf %32, %36 : vector<16x16xf32>
    %cst_14 = arith.constant dense<0.000000e+00> : vector<16x32xf32>
    %38 = tpu.matmul %37, %15, %cst_14 {dimension_numbers = #tpu.dot_dimension_numbers<[1], [0], [0], [1], [0, 0, 1, 1], [], []>} : vector<16x16xf32>, vector<16x32xf32>, vector<16x32xf32> -> vector<16x32xf32>
    %c64 = arith.constant 64 : index
    %c0_15 = arith.constant 0 : index
    %39 = vector.load %arg3[%c64, %c0_15] : memref<136x128xf32, #tpu.memory_space<vmem>>, vector<32x32xf32>
    %c129 = arith.constant 129 : index
    %c0_16 = arith.constant 0 : index
    %40 = vector.load %arg3[%c129, %c0_16] : memref<136x128xf32, #tpu.memory_space<vmem>>, vector<1x32xf32>
    %cst_17 = arith.constant dense<0.000000e+00> : vector<16x32xf32>
    %41 = tpu.matmul %38, %39, %cst_17 {dimension_numbers = #tpu.dot_dimension_numbers<[1], [0], [0], [1], [0, 0, 1, 1], [], []>} : vector<16x32xf32>, vector<32x32xf32>, vector<16x32xf32> -> vector<16x32xf32>
    %42 = vector.broadcast %40 : vector<1x32xf32> to vector<16x32xf32>
    %43 = arith.addf %41, %42 : vector<16x32xf32>
    %44 = arith.addf %7, %43 : vector<16x32xf32>
    %c130 = arith.constant 130 : index
    %c0_18 = arith.constant 0 : index
    %45 = vector.load %arg3[%c130, %c0_18] : memref<136x128xf32, #tpu.memory_space<vmem>>, vector<1x32xf32>
    %c131 = arith.constant 131 : index
    %c0_19 = arith.constant 0 : index
    %46 = vector.load %arg3[%c131, %c0_19] : memref<136x128xf32, #tpu.memory_space<vmem>>, vector<1x32xf32>
    %cst_20 = arith.constant dense<0.000000e+00> : vector<16xf32>
    %47 = vector.multi_reduction <add>, %44, %cst_20 [1] : vector<16x32xf32> to vector<16xf32>
    %48 = vector.shape_cast %47 : vector<16xf32> to vector<16x1xf32>
    %cst_21 = arith.constant 3.200000e+01 : f32
    %49 = vector.broadcast %cst_21 : f32 to vector<16x1xf32>
    %50 = arith.divf %48, %49 : vector<16x1xf32>
    %51 = vector.broadcast %50 : vector<16x1xf32> to vector<16x32xf32>
    %52 = arith.subf %44, %51 : vector<16x32xf32>
    %53 = arith.mulf %52, %52 : vector<16x32xf32>
    %cst_22 = arith.constant dense<0.000000e+00> : vector<16xf32>
    %54 = vector.multi_reduction <add>, %53, %cst_22 [1] : vector<16x32xf32> to vector<16xf32>
    %55 = vector.shape_cast %54 : vector<16xf32> to vector<16x1xf32>
    %cst_23 = arith.constant 3.200000e+01 : f32
    %56 = vector.broadcast %cst_23 : f32 to vector<16x1xf32>
    %57 = arith.divf %55, %56 : vector<16x1xf32>
    %58 = vector.broadcast %50 : vector<16x1xf32> to vector<16x32xf32>
    %59 = arith.subf %44, %58 : vector<16x32xf32>
    %cst_24 = arith.constant 9.99999974E-6 : f32
    %60 = vector.broadcast %cst_24 : f32 to vector<16x1xf32>
    %61 = arith.addf %57, %60 : vector<16x1xf32>
    %62 = math.rsqrt %61 : vector<16x1xf32>
    %63 = vector.broadcast %62 : vector<16x1xf32> to vector<16x32xf32>
    %64 = arith.mulf %59, %63 : vector<16x32xf32>
    %65 = vector.broadcast %45 : vector<1x32xf32> to vector<16x32xf32>
    %66 = arith.mulf %64, %65 : vector<16x32xf32>
    %67 = vector.broadcast %46 : vector<1x32xf32> to vector<16x32xf32>
    %68 = arith.addf %66, %67 : vector<16x32xf32>
    %69 = arith.truncf %68 : vector<16x32xf32> to vector<16x32xbf16>
    %c0_25 = arith.constant 0 : index
    %c0_26 = arith.constant 0 : index
    %70 = vector.load %arg4[%c0_25, %c0_26] : memref<32x2048xbf16, #tpu.memory_space<vmem>>, vector<32x2048xbf16>
    %cst_27 = arith.constant dense<0.000000e+00> : vector<16x2048xf32>
    %71 = tpu.matmul %69, %70, %cst_27 {dimension_numbers = #tpu.dot_dimension_numbers<[1], [0], [0], [1], [0, 0, 1, 1], [], []>} : vector<16x32xbf16>, vector<32x2048xbf16>, vector<16x2048xf32> -> vector<16x2048xf32>
    %c0_28 = arith.constant 0 : index
    %c0_29 = arith.constant 0 : index
    %72 = vector.load %arg5[%c0_28, %c0_29] : memref<1x2048xf32, #tpu.memory_space<vmem>>, vector<1x2048xf32>
    %73 = vector.broadcast %72 : vector<1x2048xf32> to vector<16x2048xf32>
    %74 = arith.addf %71, %73 : vector<16x2048xf32>
    %cst_30 = arith.constant 0.000000e+00 : f32
    %75 = vector.broadcast %cst_30 : f32 to vector<16x2048xf32>
    %76 = arith.maximumf %74, %75 : vector<16x2048xf32>
    %77 = arith.truncf %76 : vector<16x2048xf32> to vector<16x2048xbf16>
    %c0_31 = arith.constant 0 : index
    %c0_32 = arith.constant 0 : index
    %78 = vector.load %arg6[%c0_31, %c0_32] : memref<32x2048xbf16, #tpu.memory_space<vmem>>, vector<32x2048xbf16>
    %cst_33 = arith.constant dense<0.000000e+00> : vector<16x32xf32>
    %79 = tpu.matmul %77, %78, %cst_33 {dimension_numbers = #tpu.dot_dimension_numbers<[1], [1], [0], [0], [0, 0, 1, 0], [], []>} : vector<16x2048xbf16>, vector<32x2048xbf16>, vector<16x32xf32> -> vector<16x32xf32>
    %c135 = arith.constant 135 : index
    %c0_34 = arith.constant 0 : index
    %80 = vector.load %arg3[%c135, %c0_34] : memref<136x128xf32, #tpu.memory_space<vmem>>, vector<1x32xf32>
    %81 = vector.broadcast %80 : vector<1x32xf32> to vector<16x32xf32>
    %82 = arith.addf %79, %81 : vector<16x32xf32>
    %83 = arith.addf %68, %82 : vector<16x32xf32>
    %c132 = arith.constant 132 : index
    %c0_35 = arith.constant 0 : index
    %84 = vector.load %arg3[%c132, %c0_35] : memref<136x128xf32, #tpu.memory_space<vmem>>, vector<1x32xf32>
    %c133 = arith.constant 133 : index
    %c0_36 = arith.constant 0 : index
    %85 = vector.load %arg3[%c133, %c0_36] : memref<136x128xf32, #tpu.memory_space<vmem>>, vector<1x32xf32>
    %cst_37 = arith.constant dense<0.000000e+00> : vector<16xf32>
    %86 = vector.multi_reduction <add>, %83, %cst_37 [1] : vector<16x32xf32> to vector<16xf32>
    %87 = vector.shape_cast %86 : vector<16xf32> to vector<16x1xf32>
    %cst_38 = arith.constant 3.200000e+01 : f32
    %88 = vector.broadcast %cst_38 : f32 to vector<16x1xf32>
    %89 = arith.divf %87, %88 : vector<16x1xf32>
    %90 = vector.broadcast %89 : vector<16x1xf32> to vector<16x32xf32>
    %91 = arith.subf %83, %90 : vector<16x32xf32>
    %92 = arith.mulf %91, %91 : vector<16x32xf32>
    %cst_39 = arith.constant dense<0.000000e+00> : vector<16xf32>
    %93 = vector.multi_reduction <add>, %92, %cst_39 [1] : vector<16x32xf32> to vector<16xf32>
    %94 = vector.shape_cast %93 : vector<16xf32> to vector<16x1xf32>
    %cst_40 = arith.constant 3.200000e+01 : f32
    %95 = vector.broadcast %cst_40 : f32 to vector<16x1xf32>
    %96 = arith.divf %94, %95 : vector<16x1xf32>
    %97 = vector.broadcast %89 : vector<16x1xf32> to vector<16x32xf32>
    %98 = arith.subf %83, %97 : vector<16x32xf32>
    %cst_41 = arith.constant 9.99999974E-6 : f32
    %99 = vector.broadcast %cst_41 : f32 to vector<16x1xf32>
    %100 = arith.addf %96, %99 : vector<16x1xf32>
    %101 = math.rsqrt %100 : vector<16x1xf32>
    %102 = vector.broadcast %101 : vector<16x1xf32> to vector<16x32xf32>
    %103 = arith.mulf %98, %102 : vector<16x32xf32>
    %104 = vector.broadcast %84 : vector<1x32xf32> to vector<16x32xf32>
    %105 = arith.mulf %103, %104 : vector<16x32xf32>
    %106 = vector.broadcast %85 : vector<1x32xf32> to vector<16x32xf32>
    %107 = arith.addf %105, %106 : vector<16x32xf32>
    %c96 = arith.constant 96 : index
    %c0_42 = arith.constant 0 : index
    %108 = vector.load %arg3[%c96, %c0_42] : memref<136x128xf32, #tpu.memory_space<vmem>>, vector<32x128xf32>
    %c134 = arith.constant 134 : index
    %c0_43 = arith.constant 0 : index
    %109 = vector.load %arg3[%c134, %c0_43] : memref<136x128xf32, #tpu.memory_space<vmem>>, vector<1x128xf32>
    %cst_44 = arith.constant dense<0.000000e+00> : vector<16x128xf32>
    %110 = tpu.matmul %107, %108, %cst_44 {dimension_numbers = #tpu.dot_dimension_numbers<[1], [0], [0], [1], [0, 0, 1, 1], [], []>} : vector<16x32xf32>, vector<32x128xf32>, vector<16x128xf32> -> vector<16x128xf32>
    %111 = vector.broadcast %109 : vector<1x128xf32> to vector<16x128xf32>
    %112 = arith.addf %110, %111 : vector<16x128xf32>
    %c0_45 = arith.constant 0 : index
    %c0_46 = arith.constant 0 : index
    %113 = vector.load %arg7[%c0_45, %c0_46] : memref<16x128xf32, #tpu.memory_space<vmem>>, vector<16x128xf32>
    tpu.vector_store %arg7[%c0_45, %c0_46], %112 {strides = array<i32>} : memref<16x128xf32, #tpu.memory_space<vmem>>, vector<16x128xf32>,
    return
  }
  func.func @transform_0(%arg0: i32) -> (i32, i32) {
    %c0_i32 = arith.constant 0 : i32
    %c0_i32_0 = arith.constant 0 : i32
    return %arg0, %c0_i32 : i32, i32
  }
  func.func @transform_1(%arg0: i32) -> (i32, i32) {
    %c0_i32 = arith.constant 0 : i32
    %c0_i32_0 = arith.constant 0 : i32
    return %arg0, %c0_i32 : i32, i32
  }
  func.func @transform_2(%arg0: i32) -> (i32, i32) {
    %c0_i32 = arith.constant 0 : i32
    %c0_i32_0 = arith.constant 0 : i32
    %c0_i32_1 = arith.constant 0 : i32
    return %c0_i32, %c0_i32_0 : i32, i32
  }
  func.func @transform_3(%arg0: i32) -> (i32, i32) {
    %c0_i32 = arith.constant 0 : i32
    %c0_i32_0 = arith.constant 0 : i32
    %c0_i32_1 = arith.constant 0 : i32
    return %c0_i32, %c0_i32_0 : i32, i32
  }
  func.func @transform_4(%arg0: i32) -> (i32, i32) {
    %c0_i32 = arith.constant 0 : i32
    %c0_i32_0 = arith.constant 0 : i32
    %c0_i32_1 = arith.constant 0 : i32
    return %c0_i32, %c0_i32_0 : i32, i32
  }
  func.func @transform_5(%arg0: i32) -> (i32, i32) {
    %c0_i32 = arith.constant 0 : i32
    %c0_i32_0 = arith.constant 0 : i32
    %c0_i32_1 = arith.constant 0 : i32
    return %c0_i32, %c0_i32_0 : i32, i32
  }
  func.func @transform_6(%arg0: i32) -> (i32, i32) {
    %c0_i32 = arith.constant 0 : i32
    %c0_i32_0 = arith.constant 0 : i32
    return %arg0, %c0_i32 : i32, i32
  }
}

</mosaic_0001>

<llo_original>
// kernel: tinygpt_forward.1
$region0: #{tinygpt_forward.1}
  #allocation0 [shape = 'u32[]', space=smem, size = 0x4, offset = 0x4, fixed_abs, tag = 'smem constant byte address 0x4 - core index']
  #allocation1 [shape = 'u32[144,128]{1,0:T(1,128)}', space=vmem, size = 0x12000, scoped, tag = 'internal scratch']
  %s0 = inlined_call_operand.vmem [shape: s32[16,1], index: 0, kind: input, shape index: {}]
  %s1 = inlined_call_operand.vmem [shape: s32[16,1], index: 1, kind: input, shape index: {}]
  %s2 = inlined_call_operand.hbm [shape: f32[136,128], index: 2, kind: input, shape index: {}]
  %s3 = inlined_call_operand.hbm [shape: bf16[32,2048], index: 3, kind: input, shape index: {}]
  %s4 = inlined_call_operand.vmem [shape: f32[1,2048], index: 4, kind: input, shape index: {}]
  %s5 = inlined_call_operand.hbm [shape: bf16[32,2048], index: 5, kind: input, shape index: {}]
  %s6 = inlined_call_operand.vmem [shape: f32[16,128], index: 6, kind: output, shape index: {}]
  %s7 = sld [smem:[#allocation0]]
  $region46: #{tinygpt_forward.1} parent=0
    _
  %s9 = ssub.s32 1, %s7
  %s10 = scalar_select 0, %s9, %s7
  $region1: #{tinygpt_forward.1} parent=0
    #allocation2 [shape = 'u8[69632]{0}', space=vmem, size = 0x11000, scoped, tag = 'input window, operand 2, single buffered']
    #allocation3 [shape = 's32[1]{0}', space=sflag, size = 0x4, scoped, tag = 'scoped memory for tinygpt_forward.1']
    #allocation4 [shape = 'u8[131072]{0}', space=vmem, size = 0x20000, scoped, tag = 'input window, operand 3, single buffered']
    #allocation5 [shape = 's32[1]{0}', space=sflag, size = 0x4, scoped, tag = 'scoped memory for tinygpt_forward.1']
    #allocation6 [shape = 'u8[131072]{0}', space=vmem, size = 0x20000, scoped, tag = 'input window, operand 5, single buffered']
    %11 = vsyncpa [#allocation3], 0
    %12 = vsyncpa [#allocation5], 0
    // Predicated region
    $region2: #{tinygpt_forward.1} parent=1 // pred_check
      _
    $region3: #{tinygpt_forward.1} parent=1 // pred_check_branch
      %14 = sbr.rel (0) target = $region5
    $region4: #{tinygpt_forward.1} parent=1 // pred_region
      _
    $region5: #{tinygpt_forward.1} parent=1 // pred_fallthru
      _
    // Predicated region
    $region6: #{tinygpt_forward.1} parent=1 // pred_check
      _
    $region7: #{tinygpt_forward.1} parent=1 // pred_check_branch
      %16 = sbr.rel (0) target = $region9
    $region8: #{tinygpt_forward.1} parent=1 // pred_region
      _
    $region9: #{tinygpt_forward.1} parent=1 // pred_fallthru
      _
    // Predicated region
    $region10: #{tinygpt_forward.1} parent=1 // pred_check
      _
    $region11: #{tinygpt_forward.1} parent=1 // pred_check_branch
      %18 = sbr.rel (0) target = $region13
    $region12: #{tinygpt_forward.1} parent=1 // pred_region
      %s20 = ssub.s32 2176, 2176
      %21 = vsyncadd [#allocation3], %s20
      %s22 = sshll.u32 [#allocation2], 4
      %s23 = int_to_ptr.vmem [resolvable:$true] %s22
      %28 = dma.hbm_to_vmem [thread:$0]  %s2, 2176, %s23, [#allocation3], 128, 128, 8
    $region13: #{tinygpt_forward.1} parent=1 // pred_fallthru
      _
    // Predicated region
    $region14: #{tinygpt_forward.1} parent=1 // pred_check
      _
    $region15: #{tinygpt_forward.1} parent=1 // pred_check_branch
      %30 = sbr.rel (0) target = $region17
    $region16: #{tinygpt_forward.1} parent=1 // pred_region
      %s32 = ssub.s32 4096, 4096
      %33 = vsyncadd [#allocation5], %s32
      %s34 = sshll.u32 [#allocation4], 4
      %s35 = int_to_ptr.vmem [resolvable:$true] %s34
      %40 = dma.hbm_to_vmem [thread:$0]  %s3, 4096, %s35, [#allocation5], 1024, 1024, 64
    $region17: #{tinygpt_forward.1} parent=1 // pred_fallthru
      _
    // Predicated region
    $region18: #{tinygpt_forward.1} parent=1 // pred_check
      _
    $region19: #{tinygpt_forward.1} parent=1 // pred_check_branch
      %42 = sbr.rel (0) target = $region21
    $region20: #{tinygpt_forward.1} parent=1 // pred_region
      _
    $region21: #{tinygpt_forward.1} parent=1 // pred_fallthru
      _
    // Predicated region
    $region22: #{tinygpt_forward.1} parent=1 // pred_check
      _
    $region23: #{tinygpt_forward.1} parent=1 // pred_check_branch
      %44 = sbr.rel (0) target = $region25
    $region24: #{tinygpt_forward.1} parent=1 // pred_region
      %s46 = ssub.s32 4096, 4096
      %47 = vsyncadd [#allocation5], %s46
      %s48 = sshll.u32 [#allocation6], 4
      %s49 = int_to_ptr.vmem [resolvable:$true] %s48
      %54 = dma.hbm_to_vmem [thread:$0]  %s5, 4096, %s49, [#allocation5], 1024, 1024, 64
    $region25: #{tinygpt_forward.1} parent=1 // pred_fallthru
      _
    // Predicated region
    $region26: #{tinygpt_forward.1} parent=1 // pred_check
      _
    $region27: #{tinygpt_forward.1} parent=1 // pred_check_branch
      %56 = sbr.rel (0) target = $region29
    $region28: #{tinygpt_forward.1} parent=1 // pred_region
      %57 = dma.done [#allocation3], 2176
    $region29: #{tinygpt_forward.1} parent=1 // pred_fallthru
      _
    // Predicated region
    $region30: #{tinygpt_forward.1} parent=1 // pred_check
      _
    $region31: #{tinygpt_forward.1} parent=1 // pred_check_branch
      %59 = sbr.rel (0) target = $region33
    $region32: #{tinygpt_forward.1} parent=1 // pred_region
      %60 = dma.done [#allocation5], 4096
    $region33: #{tinygpt_forward.1} parent=1 // pred_fallthru
      _
    // Predicated region
    $region34: #{tinygpt_forward.1} parent=1 // pred_check
      _
    $region35: #{tinygpt_forward.1} parent=1 // pred_check_branch
      %62 = sbr.rel (0) target = $region37
    $region36: #{tinygpt_forward.1} parent=1 // pred_region
      %63 = dma.done [#allocation5], 4096
    $region37: #{tinygpt_forward.1} parent=1 // pred_fallthru
      _
    %v65 = vld [vmem:[%s0] sm:$0xff]
    %v66 = vld [vmem:[%s0 + $0x8] sm:$0xff]
    %v67 = vlaneseq
    %v68 = vand.u32 %v67, 127
    %69 = vset.pattern.permute.xlu0 0
    %70 = vperm.xlu0 %69, %v65
    %v71 = vpop.permute.xlu0 %70
    %72 = vset.pattern.permute.xlu0 0
    %73 = vperm.xlu0 %72, %v66
    %v74 = vpop.permute.xlu0 %73
    %vm75 = vcmp.eq.s32.totalorder %v71, %v68
    %vm76 = vcmp.eq.s32.totalorder %v74, %v68
    %v77 = vsel %vm75, 1, 0
    %v78 = vsel %vm76, 1, 0
    %v79 = vcvt.s32.f32 %v77
    %v80 = vcvt.s32.f32 %v78
    %v81 = vld [vmem:[#allocation2] sm:$0xff]
    %v82 = vld [vmem:[#allocation2 + $0x8] sm:$0xff]
    %v83 = vld [vmem:[#allocation2 + $0x10] sm:$0xff]
    %v84 = vld [vmem:[#allocation2 + $0x18] sm:$0xff]
    %vm85 = vcmask 261120
    %v87 = vsel %vm85, %v79, 0
    %v90 = vsel %vm85, %v80, 0
    %92 = vmatprep.subr.mxu0 0.0
    %93 = vmatpush1.msra.mxu0 %v81
    %94 = vmatprep.subr.mxu0 0.0
    %95 = vmatpush1.msra.mxu0 %v82
    %96 = vmatprep.subr.mxu0 0.0
    %97 = vmatpush1.msra.mxu0 %v83
    %98 = vmatprep.subr.mxu0 0.0
    %99 = vmatpush1.msra.mxu0 %v84
    %100 = vmatprep.subr.mxu0 0.0
    %101 = vmatpush1.msra.mxu0 0.0
    %102 = vmatprep.subr.mxu0 0.0
    %103 = vmatpush1.msra.mxu0 0.0
    %104 = vmatprep.subr.mxu0 0.0
    %105 = vmatpush1.msra.mxu0 0.0
    %106 = vmatprep.subr.mxu0 0.0
    %107 = vmatpush1.msra.mxu0 0.0
    %108 = vmatprep.subr.mxu0 0.0
    %109 = vmatpush1.msra.mxu0 0.0
    %110 = vmatprep.subr.mxu0 0.0
    %111 = vmatpush1.msra.mxu0 0.0
    %112 = vmatprep.subr.mxu0 0.0
    %113 = vmatpush1.msra.mxu0 0.0
    %114 = vmatprep.subr.mxu0 0.0
    %115 = vmatpush1.msra.mxu0 0.0
    %116 = vmatprep.subr.mxu0 0.0
    %117 = vmatpush1.msra.mxu0 0.0
    %118 = vmatprep.subr.mxu0 0.0
    %119 = vmatpush1.msra.mxu0 0.0
    %120 = vmatprep.subr.mxu0 0.0
    %121 = vmatpush1.msra.mxu0 0.0
    %122 = vmatprep.subr.mxu0 0.0
    %123 = vmatpush1.msra.mxu0 0.0
    %124 = vmatprep.subr.mxu0 0.0
    %125 = vmatpush1.msra.mxu0 0.0
    %126 = vmatprep.subr.mxu0 0.0
    %127 = vmatpush1.msra.mxu0 0.0
    %128 = vmatprep.subr.mxu0 0.0
    %129 = vmatpush1.msra.mxu0 0.0
    %130 = vmatprep.subr.mxu0 0.0
    %131 = vmatpush1.msra.mxu0 0.0
    %132 = vmatprep.subr.mxu0 0.0
    %133 = vmatpush1.msra.mxu0 0.0
    %134 = vmatprep.subr.mxu0 0.0
    %135 = vmatpush1.msra.mxu0 0.0
    %136 = vmatprep.subr.mxu0 0.0
    %137 = vmatpush1.msra.mxu0 0.0
    %138 = vmatprep.subr.mxu0 0.0
    %139 = vmatpush1.msra.mxu0 0.0
    %140 = vmatprep.subr.mxu0 0.0
    %141 = vmatpush1.msra.mxu0 0.0
    %142 = vmatprep.subr.mxu0 0.0
    %143 = vmatpush1.msra.mxu0 0.0
    %144 = vmatprep.subr.mxu0 0.0
    %145 = vmatpush1.msra.mxu0 0.0
    %146 = vmatprep.subr.mxu0 0.0
    %147 = vmatpush1.msra.mxu0 0.0
    %148 = vmatprep.subr.mxu0 0.0
    %149 = vmatpush1.msra.mxu0 0.0
    %150 = vmatprep.subr.mxu0 0.0
    %151 = vmatpush1.msra.mxu0 0.0
    %152 = vmatprep.subr.mxu0 0.0
    %153 = vmatpush1.msra.mxu0 0.0
    %154 = vmatprep.subr.mxu0 0.0
    %155 = vmatpush1.msra.mxu0 0.0
    %156 = vmatprep.mubr.f32.mxu0 0.0
    %157 = vmatmul.mubr.f32.gmra.mrb[0].mxu0 %v87
    %v158 = vpop.f32.mrb[0].mxu0
    %v159 = vadd.f32 0.0, %v158
    %v160 = vpop.f32.mrb[0].mxu0
    %161 = vmatprep.mubr.f32.mxu0 0.0
    %162 = vmatmul.mubr.f32.gmra.mrb[0].mxu0 %v90
    %v163 = vpop.f32.mrb[0].mxu0
    %v164 = vadd.f32 0.0, %v163
    %v165 = vpop.f32.mrb[0].mxu0
    %166 = vdwg.mxu0
    %v167 = vld [vmem:[#allocation2 + $0x20] sm:$0xff]
    %v168 = vld [vmem:[#allocation2 + $0x28] sm:$0xff]
    %v169 = vld [vmem:[#allocation2 + $0x30] sm:$0xff]
    %v170 = vld [vmem:[#allocation2 + $0x38] sm:$0xff]
    %v171 = vld [vmem:[#allocation2 + $0x80] sm:$0x1]
    %v172 = vlaneseq
    %v173 = vshrl.u32 %v172, 7
    %v174 = vsub.s32 0, %v173
    %v175 = vrot.slane %v171, %v174
    %v177 = vsel %vm85, %v159, 0
    %v180 = vsel %vm85, %v164, 0
    %182 = vmatprep.subr.mxu0 0.0
    %183 = vmatpush1.msra.mxu0 %v167
    %184 = vmatprep.subr.mxu0 0.0
    %185 = vmatpush1.msra.mxu0 %v168
    %186 = vmatprep.subr.mxu0 0.0
    %187 = vmatpush1.msra.mxu0 %v169
    %188 = vmatprep.subr.mxu0 0.0
    %189 = vmatpush1.msra.mxu0 %v170
    %190 = vmatprep.subr.mxu0 0.0
    %191 = vmatpush1.msra.mxu0 0.0
    %192 = vmatprep.subr.mxu0 0.0
    %193 = vmatpush1.msra.mxu0 0.0
    %194 = vmatprep.subr.mxu0 0.0
    %195 = vmatpush1.msra.mxu0 0.0
    %196 = vmatprep.subr.mxu0 0.0
    %197 = vmatpush1.msra.mxu0 0.0
    %198 = vmatprep.subr.mxu0 0.0
    %199 = vmatpush1.msra.mxu0 0.0
    %200 = vmatprep.subr.mxu0 0.0
    %201 = vmatpush1.msra.mxu0 0.0
    %202 = vmatprep.subr.mxu0 0.0
    %203 = vmatpush1.msra.mxu0 0.0
    %204 = vmatprep.subr.mxu0 0.0
    %205 = vmatpush1.msra.mxu0 0.0
    %206 = vmatprep.subr.mxu0 0.0
    %207 = vmatpush1.msra.mxu0 0.0
    %208 = vmatprep.subr.mxu0 0.0
    %209 = vmatpush1.msra.mxu0 0.0
    %210 = vmatprep.subr.mxu0 0.0
    %211 = vmatpush1.msra.mxu0 0.0
    %212 = vmatprep.subr.mxu0 0.0
    %213 = vmatpush1.msra.mxu0 0.0
    %214 = vmatprep.subr.mxu0 0.0
    %215 = vmatpush1.msra.mxu0 0.0
    %216 = vmatprep.subr.mxu0 0.0
    %217 = vmatpush1.msra.mxu0 0.0
    %218 = vmatprep.subr.mxu0 0.0
    %219 = vmatpush1.msra.mxu0 0.0
    %220 = vmatprep.subr.mxu0 0.0
    %221 = vmatpush1.msra.mxu0 0.0
    %222 = vmatprep.subr.mxu0 0.0
    %223 = vmatpush1.msra.mxu0 0.0
    %224 = vmatprep.subr.mxu0 0.0
    %225 = vmatpush1.msra.mxu0 0.0
    %226 = vmatprep.subr.mxu0 0.0
    %227 = vmatpush1.msra.mxu0 0.0
    %228 = vmatprep.subr.mxu0 0.0
    %229 = vmatpush1.msra.mxu0 0.0
    %230 = vmatprep.subr.mxu0 0.0
    %231 = vmatpush1.msra.mxu0 0.0
    %232 = vmatprep.subr.mxu0 0.0
    %233 = vmatpush1.msra.mxu0 0.0
    %234 = vmatprep.subr.mxu0 0.0
    %235 = vmatpush1.msra.mxu0 0.0
    %236 = vmatprep.subr.mxu0 0.0
    %237 = vmatpush1.msra.mxu0 0.0
    %238 = vmatprep.subr.mxu0 0.0
    %239 = vmatpush1.msra.mxu0 0.0
    %240 = vmatprep.subr.mxu0 0.0
    %241 = vmatpush1.msra.mxu0 0.0
    %242 = vmatprep.subr.mxu0 0.0
    %243 = vmatpush1.msra.mxu0 0.0
    %244 = vmatprep.subr.mxu0 0.0
    %245 = vmatpush1.msra.mxu0 0.0
    %246 = vmatprep.mubr.f32.mxu0 0.0
    %247 = vmatmul.mubr.f32.gmra.mrb[0].mxu0 %v177
    %v248 = vpop.f32.mrb[0].mxu0
    %v249 = vadd.f32 %v175, %v248
    %v250 = vpop.f32.mrb[0].mxu0
    %251 = vmatprep.mubr.f32.mxu0 0.0
    %252 = vmatmul.mubr.f32.gmra.mrb[0].mxu0 %v180
    %v253 = vpop.f32.mrb[0].mxu0
    %v254 = vadd.f32 %v175, %v253
    %v255 = vpop.f32.mrb[0].mxu0
    %256 = vdwg.mxu0
    %259 = vrot.lane.b32.xlu0 %v249, 96
    %v260 = vpop.permute.xlu0 %259
    %261 = vrot.lane.b32.xlu0 %v254, 96
    %v262 = vpop.permute.xlu0 %261
    %v263 = vsel %vm85, %v249, 0
    %v265 = vsel %vm85, %v254, 0
    %v267 = vsel %vm85, %v260, 0
    %v269 = vsel %vm85, %v262, 0
    %271 = vmatprep.subr.mxu0 0.0
    %272 = vmatpush1.xpose.msra.mxu0 %v267
    %273 = vmatprep.subr.mxu0 0.0
    %274 = vmatpush1.xpose.msra.mxu0 %v269
    %275 = vmatprep.subr.mxu0 0.0
    %276 = vmatpush1.xpose.msra.mxu0 0.0
    %277 = vmatprep.subr.mxu0 0.0
    %278 = vmatpush1.xpose.msra.mxu0 0.0
    %279 = vmatprep.subr.mxu0 0.0
    %280 = vmatpush1.xpose.msra.mxu0 0.0
    %281 = vmatprep.subr.mxu0 0.0
    %282 = vmatpush1.xpose.msra.mxu0 0.0
    %283 = vmatprep.subr.mxu0 0.0
    %284 = vmatpush1.xpose.msra.mxu0 0.0
    %285 = vmatprep.subr.mxu0 0.0
    %286 = vmatpush1.xpose.msra.mxu0 0.0
    %287 = vmatprep.subr.mxu0 0.0
    %288 = vmatpush1.xpose.msra.mxu0 0.0
    %289 = vmatprep.subr.mxu0 0.0
    %290 = vmatpush1.xpose.msra.mxu0 0.0
    %291 = vmatprep.subr.mxu0 0.0
    %292 = vmatpush1.xpose.msra.mxu0 0.0
    %293 = vmatprep.subr.mxu0 0.0
    %294 = vmatpush1.xpose.msra.mxu0 0.0
    %295 = vmatprep.subr.mxu0 0.0
    %296 = vmatpush1.xpose.msra.mxu0 0.0
    %297 = vmatprep.subr.mxu0 0.0
    %298 = vmatpush1.xpose.msra.mxu0 0.0
    %299 = vmatprep.subr.mxu0 0.0
    %300 = vmatpush1.xpose.msra.mxu0 0.0
    %301 = vmatprep.subr.mxu0 0.0
    %302 = vmatpush1.xpose.msra.mxu0 0.0
    %303 = vmatprep.subr.mxu0 0.0
    %304 = vmatpush1.xpose.msra.mxu0 0.0
    %305 = vmatprep.subr.mxu0 0.0
    %306 = vmatpush1.xpose.msra.mxu0 0.0
    %307 = vmatprep.subr.mxu0 0.0
    %308 = vmatpush1.xpose.msra.mxu0 0.0
    %309 = vmatprep.subr.mxu0 0.0
    %310 = vmatpush1.xpose.msra.mxu0 0.0
    %311 = vmatprep.subr.mxu0 0.0
    %312 = vmatpush1.xpose.msra.mxu0 0.0
    %313 = vmatprep.subr.mxu0 0.0
    %314 = vmatpush1.xpose.msra.mxu0 0.0
    %315 = vmatprep.subr.mxu0 0.0
    %316 = vmatpush1.xpose.msra.mxu0 0.0
    %317 = vmatprep.subr.mxu0 0.0
    %318 = vmatpush1.xpose.msra.mxu0 0.0
    %319 = vmatprep.subr.mxu0 0.0
    %320 = vmatpush1.xpose.msra.mxu0 0.0
    %321 = vmatprep.subr.mxu0 0.0
    %322 = vmatpush1.xpose.msra.mxu0 0.0
    %323 = vmatprep.subr.mxu0 0.0
    %324 = vmatpush1.xpose.msra.mxu0 0.0
    %325 = vmatprep.subr.mxu0 0.0
    %326 = vmatpush1.xpose.msra.mxu0 0.0
    %327 = vmatprep.subr.mxu0 0.0
    %328 = vmatpush1.xpose.msra.mxu0 0.0
    %329 = vmatprep.subr.mxu0 0.0
    %330 = vmatpush1.xpose.msra.mxu0 0.0
    %331 = vmatprep.subr.mxu0 0.0
    %332 = vmatpush1.xpose.msra.mxu0 0.0
    %333 = vmatprep.subr.mxu0 0.0
    %334 = vmatpush1.xpose.msra.mxu0 0.0
    %335 = vmatprep.mubr.f32.mxu0 0.0
    %336 = vmatmul.mubr.f32.gmra.mrb[0].mxu0 %v263
    %v337 = vpop.f32.mrb[0].mxu0
    %v338 = vadd.f32 0.0, %v337
    %v339 = vpop.f32.mrb[0].mxu0
    %340 = vmatprep.mubr.f32.mxu0 0.0
    %341 = vmatmul.mubr.f32.gmra.mrb[0].mxu0 %v265
    %v342 = vpop.f32.mrb[0].mxu0
    %v343 = vadd.f32 0.0, %v342
    %v344 = vpop.f32.mrb[0].mxu0
    %345 = vdwg.mxu0
    %v346 = vld [vmem:[%s1] sm:$0xff]
    %v347 = vld [vmem:[%s1 + $0x8] sm:$0xff]
    %348 = vset.pattern.permute.xlu0 0
    %349 = vperm.xlu0 %348, %v346
    %v350 = vpop.permute.xlu0 %349
    %351 = vset.pattern.permute.xlu0 0
    %352 = vperm.xlu0 %351, %v347
    %v353 = vpop.permute.xlu0 %352
    %vm354 = vcmp.eq.s32.totalorder %v350, %v68
    %vm355 = vcmp.eq.s32.totalorder %v353, %v68
    %v356 = vsel %vm354, 1, 0
    %v357 = vsel %vm355, 1, 0
    %v358 = vcvt.s32.f32 %v356
    %v359 = vcvt.s32.f32 %v357
    %vm360 = vcmask 64512
    %v362 = vsel %vm360, %v358, 0
    %v365 = vsel %vm360, %v359, 0
    %367 = vmatprep.subr.mxu0 0.0
    %368 = vmatpush1.xpose.msra.mxu0 %v362
    %369 = vmatprep.subr.mxu0 0.0
    %370 = vmatpush1.xpose.msra.mxu0 %v365
    %371 = vmatprep.subr.mxu0 0.0
    %372 = vmatpush1.xpose.msra.mxu0 0.0
    %373 = vmatprep.subr.mxu0 0.0
    %374 = vmatpush1.xpose.msra.mxu0 0.0
    %375 = vmatprep.subr.mxu0 0.0
    %376 = vmatpush1.xpose.msra.mxu0 0.0
    %377 = vmatprep.subr.mxu0 0.0
    %378 = vmatpush1.xpose.msra.mxu0 0.0
    %379 = vmatprep.subr.mxu0 0.0
    %380 = vmatpush1.xpose.msra.mxu0 0.0
    %381 = vmatprep.subr.mxu0 0.0
    %382 = vmatpush1.xpose.msra.mxu0 0.0
    %383 = vmatprep.subr.mxu0 0.0
    %384 = vmatpush1.xpose.msra.mxu0 0.0
    %385 = vmatprep.subr.mxu0 0.0
    %386 = vmatpush1.xpose.msra.mxu0 0.0
    %387 = vmatprep.subr.mxu0 0.0
    %388 = vmatpush1.xpose.msra.mxu0 0.0
    %389 = vmatprep.subr.mxu0 0.0
    %390 = vmatpush1.xpose.msra.mxu0 0.0
    %391 = vmatprep.subr.mxu0 0.0
    %392 = vmatpush1.xpose.msra.mxu0 0.0
    %393 = vmatprep.subr.mxu0 0.0
    %394 = vmatpush1.xpose.msra.mxu0 0.0
    %395 = vmatprep.subr.mxu0 0.0
    %396 = vmatpush1.xpose.msra.mxu0 0.0
    %397 = vmatprep.subr.mxu0 0.0
    %398 = vmatpush1.xpose.msra.mxu0 0.0
    %399 = vmatprep.subr.mxu0 0.0
    %400 = vmatpush1.xpose.msra.mxu0 0.0
    %401 = vmatprep.subr.mxu0 0.0
    %402 = vmatpush1.xpose.msra.mxu0 0.0
    %403 = vmatprep.subr.mxu0 0.0
    %404 = vmatpush1.xpose.msra.mxu0 0.0
    %405 = vmatprep.subr.mxu0 0.0
    %406 = vmatpush1.xpose.msra.mxu0 0.0
    %407 = vmatprep.subr.mxu0 0.0
    %408 = vmatpush1.xpose.msra.mxu0 0.0
    %409 = vmatprep.subr.mxu0 0.0
    %410 = vmatpush1.xpose.msra.mxu0 0.0
    %411 = vmatprep.subr.mxu0 0.0
    %412 = vmatpush1.xpose.msra.mxu0 0.0
    %413 = vmatprep.subr.mxu0 0.0
    %414 = vmatpush1.xpose.msra.mxu0 0.0
    %415 = vmatprep.subr.mxu0 0.0
    %416 = vmatpush1.xpose.msra.mxu0 0.0
    %417 = vmatprep.subr.mxu0 0.0
    %418 = vmatpush1.xpose.msra.mxu0 0.0
    %419 = vmatprep.subr.mxu0 0.0
    %420 = vmatpush1.xpose.msra.mxu0 0.0
    %421 = vmatprep.subr.mxu0 0.0
    %422 = vmatpush1.xpose.msra.mxu0 0.0
    %423 = vmatprep.subr.mxu0 0.0
    %424 = vmatpush1.xpose.msra.mxu0 0.0
    %425 = vmatprep.subr.mxu0 0.0
    %426 = vmatpush1.xpose.msra.mxu0 0.0
    %427 = vmatprep.subr.mxu0 0.0
    %428 = vmatpush1.xpose.msra.mxu0 0.0
    %429 = vmatprep.subr.mxu0 0.0
    %430 = vmatpush1.xpose.msra.mxu0 0.0
    %431 = vmatprep.mubr.f32.mxu0 0.0
    %432 = vmatmul.mubr.f32.gmra.mrb[0].mxu0 %v362
    %v433 = vpop.f32.mrb[0].mxu0
    %v434 = vadd.f32 0.0, %v433
    %v435 = vpop.f32.mrb[0].mxu0
    %436 = vmatprep.mubr.f32.mxu0 0.0
    %437 = vmatmul.mubr.f32.gmra.mrb[0].mxu0 %v365
    %v438 = vpop.f32.mrb[0].mxu0
    %v439 = vadd.f32 0.0, %v438
    %v440 = vpop.f32.mrb[0].mxu0
    %441 = vdwg.mxu0
    %vm442 = vcmp.gt.f32.partialorder %v434, 0.5
    %vm443 = vcmp.gt.f32.partialorder %v439, 0.5
    %v444 = vsel %vm442, %v338, -1e+30
    %v445 = vsel %vm443, %v343, -1e+30
    %vm446 = vcmask 130048
    %v447 = vsel %vm446, %v444, -inf
    %448 = vmax.xlane.f32.xlu0 %v447
    %v449 = vpop.xlane.xlu0 %448
    %v450 = vsel %vm446, %v445, -inf
    %451 = vmax.xlane.f32.xlu0 %v450
    %v452 = vpop.xlane.xlu0 %451
    %v453 = vsub.f32 %v444, %v449
    %v454 = vsub.f32 %v445, %v452
    %v455 = vmul.f32 %v453, 1.442695
    %v456 = vpow.pop %v455
    %v457 = vmul.f32 %v454, 1.442695
    %v458 = vpow.pop %v457
    %v459 = vsel %vm446, %v456, 0.0
    %460 = vadd.xlane.f32.xlu0 %v459
    %v461 = vpop.xlane.xlu0 %460
    %v462 = vsel %vm446, %v458, 0.0
    %463 = vadd.xlane.f32.xlu0 %v462
    %v464 = vpop.xlane.xlu0 %463
    %v465 = vrcp.pop %v461
    %v466 = vrcp.pop %v464
    %v467 = vmul.f32 %v456, %v465
    %v468 = vmul.f32 %v458, %v466
    %469 = vrot.lane.b32.xlu0 %v249, 64
    %v470 = vpop.permute.xlu0 %469
    %471 = vrot.lane.b32.xlu0 %v254, 64
    %v472 = vpop.permute.xlu0 %471
    %v476 = vsel %vm446, %v467, 0
    %v479 = vsel %vm446, %v468, 0
    %481 = vmatprep.subr.mxu0 0.0
    %482 = vmatpush1.msra.mxu0 %v470
    %483 = vmatprep.subr.mxu0 0.0
    %484 = vmatpush1.msra.mxu0 %v472
    %485 = vmatprep.subr.mxu0 0.0
    %486 = vmatpush1.msra.mxu0 0.0
    %487 = vmatprep.subr.mxu0 0.0
    %488 = vmatpush1.msra.mxu0 0.0
    %489 = vmatprep.subr.mxu0 0.0
    %490 = vmatpush1.msra.mxu0 0.0
    %491 = vmatprep.subr.mxu0 0.0
    %492 = vmatpush1.msra.mxu0 0.0
    %493 = vmatprep.subr.mxu0 0.0
    %494 = vmatpush1.msra.mxu0 0.0
    %495 = vmatprep.subr.mxu0 0.0
    %496 = vmatpush1.msra.mxu0 0.0
    %497 = vmatprep.subr.mxu0 0.0
    %498 = vmatpush1.msra.mxu0 0.0
    %499 = vmatprep.subr.mxu0 0.0
    %500 = vmatpush1.msra.mxu0 0.0
    %501 = vmatprep.subr.mxu0 0.0
    %502 = vmatpush1.msra.mxu0 0.0
    %503 = vmatprep.subr.mxu0 0.0
    %504 = vmatpush1.msra.mxu0 0.0
    %505 = vmatprep.subr.mxu0 0.0
    %506 = vmatpush1.msra.mxu0 0.0
    %507 = vmatprep.subr.mxu0 0.0
    %508 = vmatpush1.msra.mxu0 0.0
    %509 = vmatprep.subr.mxu0 0.0
    %510 = vmatpush1.msra.mxu0 0.0
    %511 = vmatprep.subr.mxu0 0.0
    %512 = vmatpush1.msra.mxu0 0.0
    %513 = vmatprep.subr.mxu0 0.0
    %514 = vmatpush1.msra.mxu0 0.0
    %515 = vmatprep.subr.mxu0 0.0
    %516 = vmatpush1.msra.mxu0 0.0
    %517 = vmatprep.subr.mxu0 0.0
    %518 = vmatpush1.msra.mxu0 0.0
    %519 = vmatprep.subr.mxu0 0.0
    %520 = vmatpush1.msra.mxu0 0.0
    %521 = vmatprep.subr.mxu0 0.0
    %522 = vmatpush1.msra.mxu0 0.0
    %523 = vmatprep.subr.mxu0 0.0
    %524 = vmatpush1.msra.mxu0 0.0
    %525 = vmatprep.subr.mxu0 0.0
    %526 = vmatpush1.msra.mxu0 0.0
    %527 = vmatprep.subr.mxu0 0.0
    %528 = vmatpush1.msra.mxu0 0.0
    %529 = vmatprep.subr.mxu0 0.0
    %530 = vmatpush1.msra.mxu0 0.0
    %531 = vmatprep.subr.mxu0 0.0
    %532 = vmatpush1.msra.mxu0 0.0
    %533 = vmatprep.subr.mxu0 0.0
    %534 = vmatpush1.msra.mxu0 0.0
    %535 = vmatprep.subr.mxu0 0.0
    %536 = vmatpush1.msra.mxu0 0.0
    %537 = vmatprep.subr.mxu0 0.0
    %538 = vmatpush1.msra.mxu0 0.0
    %539 = vmatprep.subr.mxu0 0.0
    %540 = vmatpush1.msra.mxu0 0.0
    %541 = vmatprep.subr.mxu0 0.0
    %542 = vmatpush1.msra.mxu0 0.0
    %543 = vmatprep.subr.mxu0 0.0
    %544 = vmatpush1.msra.mxu0 0.0
    %545 = vmatprep.mubr.f32.mxu0 0.0
    %546 = vmatmul.mubr.f32.gmra.mrb[0].mxu0 %v476
    %v547 = vpop.f32.mrb[0].mxu0
    %v548 = vadd.f32 0.0, %v547
    %v549 = vpop.f32.mrb[0].mxu0
    %550 = vmatprep.mubr.f32.mxu0 0.0
    %551 = vmatmul.mubr.f32.gmra.mrb[0].mxu0 %v479
    %v552 = vpop.f32.mrb[0].mxu0
    %v553 = vadd.f32 0.0, %v552
    %v554 = vpop.f32.mrb[0].mxu0
    %555 = vdwg.mxu0
    %v556 = vld [vmem:[#allocation2 + $0x40] sm:$0xff]
    %v557 = vld [vmem:[#allocation2 + $0x48] sm:$0xff]
    %v558 = vld [vmem:[#allocation2 + $0x50] sm:$0xff]
    %v559 = vld [vmem:[#allocation2 + $0x58] sm:$0xff]
    %v560 = vld [vmem:[#allocation2 + $0x81] sm:$0x1]
    %v561 = vlaneseq
    %v562 = vshrl.u32 %v561, 7
    %v563 = vsub.s32 0, %v562
    %v564 = vrot.slane %v560, %v563
    %v566 = vsel %vm85, %v548, 0
    %v569 = vsel %vm85, %v553, 0
    %571 = vmatprep.subr.mxu0 0.0
    %572 = vmatpush1.msra.mxu0 %v556
    %573 = vmatprep.subr.mxu0 0.0
    %574 = vmatpush1.msra.mxu0 %v557
    %575 = vmatprep.subr.mxu0 0.0
    %576 = vmatpush1.msra.mxu0 %v558
    %577 = vmatprep.subr.mxu0 0.0
    %578 = vmatpush1.msra.mxu0 %v559
    %579 = vmatprep.subr.mxu0 0.0
    %580 = vmatpush1.msra.mxu0 0.0
    %581 = vmatprep.subr.mxu0 0.0
    %582 = vmatpush1.msra.mxu0 0.0
    %583 = vmatprep.subr.mxu0 0.0
    %584 = vmatpush1.msra.mxu0 0.0
    %585 = vmatprep.subr.mxu0 0.0
    %586 = vmatpush1.msra.mxu0 0.0
    %587 = vmatprep.subr.mxu0 0.0
    %588 = vmatpush1.msra.mxu0 0.0
    %589 = vmatprep.subr.mxu0 0.0
    %590 = vmatpush1.msra.mxu0 0.0
    %591 = vmatprep.subr.mxu0 0.0
    %592 = vmatpush1.msra.mxu0 0.0
    %593 = vmatprep.subr.mxu0 0.0
    %594 = vmatpush1.msra.mxu0 0.0
    %595 = vmatprep.subr.mxu0 0.0
    %596 = vmatpush1.msra.mxu0 0.0
    %597 = vmatprep.subr.mxu0 0.0
    %598 = vmatpush1.msra.mxu0 0.0
    %599 = vmatprep.subr.mxu0 0.0
    %600 = vmatpush1.msra.mxu0 0.0
    %601 = vmatprep.subr.mxu0 0.0
    %602 = vmatpush1.msra.mxu0 0.0
    %603 = vmatprep.subr.mxu0 0.0
    %604 = vmatpush1.msra.mxu0 0.0
    %605 = vmatprep.subr.mxu0 0.0
    %606 = vmatpush1.msra.mxu0 0.0
    %607 = vmatprep.subr.mxu0 0.0
    %608 = vmatpush1.msra.mxu0 0.0
    %609 = vmatprep.subr.mxu0 0.0
    %610 = vmatpush1.msra.mxu0 0.0
    %611 = vmatprep.subr.mxu0 0.0
    %612 = vmatpush1.msra.mxu0 0.0
    %613 = vmatprep.subr.mxu0 0.0
    %614 = vmatpush1.msra.mxu0 0.0
    %615 = vmatprep.subr.mxu0 0.0
    %616 = vmatpush1.msra.mxu0 0.0
    %617 = vmatprep.subr.mxu0 0.0
    %618 = vmatpush1.msra.mxu0 0.0
    %619 = vmatprep.subr.mxu0 0.0
    %620 = vmatpush1.msra.mxu0 0.0
    %621 = vmatprep.subr.mxu0 0.0
    %622 = vmatpush1.msra.mxu0 0.0
    %623 = vmatprep.subr.mxu0 0.0
    %624 = vmatpush1.msra.mxu0 0.0
    %625 = vmatprep.subr.mxu0 0.0
    %626 = vmatpush1.msra.mxu0 0.0
    %627 = vmatprep.subr.mxu0 0.0
    %628 = vmatpush1.msra.mxu0 0.0
    %629 = vmatprep.subr.mxu0 0.0
    %630 = vmatpush1.msra.mxu0 0.0
    %631 = vmatprep.subr.mxu0 0.0
    %632 = vmatpush1.msra.mxu0 0.0
    %633 = vmatprep.subr.mxu0 0.0
    %634 = vmatpush1.msra.mxu0 0.0
    %635 = vmatprep.mubr.f32.mxu0 0.0
    %636 = vmatmul.mubr.f32.gmra.mrb[0].mxu0 %v566
    %v637 = vpop.f32.mrb[0].mxu0
    %v638 = vadd.f32 %v564, %v637
    %v639 = vpop.f32.mrb[0].mxu0
    %640 = vmatprep.mubr.f32.mxu0 0.0
    %641 = vmatmul.mubr.f32.gmra.mrb[0].mxu0 %v569
    %v642 = vpop.f32.mrb[0].mxu0
    %v643 = vadd.f32 %v564, %v642
    %v644 = vpop.f32.mrb[0].mxu0
    %645 = vdwg.mxu0
    %v646 = vadd.f32 %v159, %v638
    %v647 = vadd.f32 %v164, %v643
    %v648 = vld [vmem:[#allocation2 + $0x82] sm:$0x1]
    %v649 = vld [vmem:[#allocation2 + $0x83] sm:$0x1]
    %v650 = vsel %vm85, %v646, 0.0
    %651 = vadd.xlane.f32.xlu0 %v650
    %v652 = vpop.xlane.xlu0 %651
    %v653 = vsel %vm85, %v647, 0.0
    %654 = vadd.xlane.f32.xlu0 %v653
    %v655 = vpop.xlane.xlu0 %654
    %v656 = vrcp.pop 32.0
    %v657 = vmul.f32 %v652, %v656
    %v658 = vmul.f32 %v655, %v656
    %v659 = vsub.f32 %v646, %v657
    %v660 = vsub.f32 %v647, %v658
    %v661 = vmul.f32 %v659, %v659
    %v662 = vmul.f32 %v660, %v660
    %v663 = vsel %vm85, %v661, 0.0
    %664 = vadd.xlane.f32.xlu0 %v663
    %v665 = vpop.xlane.xlu0 %664
    %v666 = vsel %vm85, %v662, 0.0
    %667 = vadd.xlane.f32.xlu0 %v666
    %v668 = vpop.xlane.xlu0 %667
    %v669 = vmul.f32 %v665, %v656
    %v670 = vmul.f32 %v668, %v656
    %v671 = vadd.f32 %v669, 1e-05
    %v672 = vadd.f32 %v670, 1e-05
    %v673 = vrsqrt.pop %v671
    %v674 = vrsqrt.pop %v672
    %v675 = vmul.f32 %v659, %v673
    %v676 = vmul.f32 %v660, %v674
    %v677 = vlaneseq
    %v678 = vshrl.u32 %v677, 7
    %v679 = vsub.s32 0, %v678
    %v680 = vrot.slane %v648, %v679
    %v681 = vmul.f32 %v675, %v680
    %v682 = vmul.f32 %v676, %v680
    %v683 = vlaneseq
    %v684 = vshrl.u32 %v683, 7
    %v685 = vsub.s32 0, %v684
    %v686 = vrot.slane %v649, %v685
    %v687 = vadd.f32 %v681, %v686
    %v688 = vadd.f32 %v682, %v686
    %v689 = vpack.c.bf16 %v688, %v687
    %v690 = vld [vmem:[#allocation4] sm:$0xff]
    %v691 = vld [vmem:[#allocation4 + $0x8] sm:$0xff]
    %v692 = vld [vmem:[#allocation4 + $0x10] sm:$0xff]
    %v693 = vld [vmem:[#allocation4 + $0x18] sm:$0xff]
    %v694 = vld [vmem:[#allocation4 + $0x20] sm:$0xff]
    %v695 = vld [vmem:[#allocation4 + $0x28] sm:$0xff]
    %v696 = vld [vmem:[#allocation4 + $0x30] sm:$0xff]
    %v697 = vld [vmem:[#allocation4 + $0x38] sm:$0xff]
    %v698 = vld [vmem:[#allocation4 + $0x40] sm:$0xff]
    %v699 = vld [vmem:[#allocation4 + $0x48] sm:$0xff]
    %v700 = vld [vmem:[#allocation4 + $0x50] sm:$0xff]
    %v701 = vld [vmem:[#allocation4 + $0x58] sm:$0xff]
    %v702 = vld [vmem:[#allocation4 + $0x60] sm:$0xff]
    %v703 = vld [vmem:[#allocation4 + $0x68] sm:$0xff]
    %v704 = vld [vmem:[#allocation4 + $0x70] sm:$0xff]
    %v705 = vld [vmem:[#allocation4 + $0x78] sm:$0xff]
    %v706 = vld [vmem:[#allocation4 + $0x80] sm:$0xff]
    %v707 = vld [vmem:[#allocation4 + $0x88] sm:$0xff]
    %v708 = vld [vmem:[#allocation4 + $0x90] sm:$0xff]
    %v709 = vld [vmem:[#allocation4 + $0x98] sm:$0xff]
    %v710 = vld [vmem:[#allocation4 + $0xa0] sm:$0xff]
    %v711 = vld [vmem:[#allocation4 + $0xa8] sm:$0xff]
    %v712 = vld [vmem:[#allocation4 + $0xb0] sm:$0xff]
    %v713 = vld [vmem:[#allocation4 + $0xb8] sm:$0xff]
    %v714 = vld [vmem:[#allocation4 + $0xc0] sm:$0xff]
    %v715 = vld [vmem:[#allocation4 + $0xc8] sm:$0xff]
    %v716 = vld [vmem:[#allocation4 + $0xd0] sm:$0xff]
    %v717 = vld [vmem:[#allocation4 + $0xd8] sm:$0xff]
    %v718 = vld [vmem:[#allocation4 + $0xe0] sm:$0xff]
    %v719 = vld [vmem:[#allocation4 + $0xe8] sm:$0xff]
    %v720 = vld [vmem:[#allocation4 + $0xf0] sm:$0xff]
    %v721 = vld [vmem:[#allocation4 + $0xf8] sm:$0xff]
    %v722 = vld [vmem:[%s4] sm:$0xff]
    %v723 = vld [vmem:[%s4 + $0x8] sm:$0xff]
    %v726 = vlaneseq
    %v727 = vshrl.u32 %v726, 7
    %v728 = vsub.s32 0, %v727
    %v729 = vrot.slane %v722, %v728
    %v730 = vlaneseq
    %v731 = vshrl.u32 %v730, 7
    %v732 = vsub.s32 1, %v731
    %v733 = vrot.slane %v722, %v732
    %v734 = vlaneseq
    %v735 = vshrl.u32 %v734, 7
    %v736 = vsub.s32 2, %v735
    %v737 = vrot.slane %v722, %v736
    %v738 = vlaneseq
    %v739 = vshrl.u32 %v738, 7
    %v740 = vsub.s32 3, %v739
    %v741 = vrot.slane %v722, %v740
    %v742 = vlaneseq
    %v743 = vshrl.u32 %v742, 7
    %v744 = vsub.s32 4, %v743
    %v745 = vrot.slane %v722, %v744
    %v746 = vlaneseq
    %v747 = vshrl.u32 %v746, 7
    %v748 = vsub.s32 5, %v747
    %v749 = vrot.slane %v722, %v748
    %v750 = vlaneseq
    %v751 = vshrl.u32 %v750, 7
    %v752 = vsub.s32 6, %v751
    %v753 = vrot.slane %v722, %v752
    %v754 = vlaneseq
    %v755 = vshrl.u32 %v754, 7
    %v756 = vsub.s32 7, %v755
    %v757 = vrot.slane %v722, %v756
    %v758 = vlaneseq
    %v759 = vshrl.u32 %v758, 7
    %v760 = vsub.s32 0, %v759
    %v761 = vrot.slane %v723, %v760
    %v762 = vlaneseq
    %v763 = vshrl.u32 %v762, 7
    %v764 = vsub.s32 1, %v763
    %v765 = vrot.slane %v723, %v764
    %v766 = vlaneseq
    %v767 = vshrl.u32 %v766, 7
    %v768 = vsub.s32 2, %v767
    %v769 = vrot.slane %v723, %v768
    %v770 = vlaneseq
    %v771 = vshrl.u32 %v770, 7
    %v772 = vsub.s32 3, %v771
    %v773 = vrot.slane %v723, %v772
    %v774 = vlaneseq
    %v775 = vshrl.u32 %v774, 7
    %v776 = vsub.s32 4, %v775
    %v777 = vrot.slane %v723, %v776
    %v778 = vlaneseq
    %v779 = vshrl.u32 %v778, 7
    %v780 = vsub.s32 5, %v779
    %v781 = vrot.slane %v723, %v780
    %v782 = vlaneseq
    %v783 = vshrl.u32 %v782, 7
    %v784 = vsub.s32 6, %v783
    %v785 = vrot.slane %v723, %v784
    %v786 = vlaneseq
    %v787 = vshrl.u32 %v786, 7
    %v788 = vsub.s32 7, %v787
    %v789 = vrot.slane %v723, %v788
    %v838 = vunpack.c.l.b16 %v690
    %v839 = vunpack.c.h.b16 %v690
    %v840 = vunpack.c.l.b16 %v691
    %v841 = vunpack.c.h.b16 %v691
    %v842 = vunpack.c.l.b16 %v692
    %v843 = vunpack.c.h.b16 %v692
    %v844 = vunpack.c.l.b16 %v693
    %v845 = vunpack.c.h.b16 %v693
    %v846 = vunpack.c.l.b16 %v694
    %v847 = vunpack.c.h.b16 %v694
    %v848 = vunpack.c.l.b16 %v695
    %v849 = vunpack.c.h.b16 %v695
    %v850 = vunpack.c.l.b16 %v696
    %v851 = vunpack.c.h.b16 %v696
    %v852 = vunpack.c.l.b16 %v697
    %v853 = vunpack.c.h.b16 %v697
    %v854 = vunpack.c.l.b16 %v698
    %v855 = vunpack.c.h.b16 %v698
    %v856 = vunpack.c.l.b16 %v699
    %v857 = vunpack.c.h.b16 %v699
    %v858 = vunpack.c.l.b16 %v700
    %v859 = vunpack.c.h.b16 %v700
    %v860 = vunpack.c.l.b16 %v701
    %v861 = vunpack.c.h.b16 %v701
    %v862 = vunpack.c.l.b16 %v702
    %v863 = vunpack.c.h.b16 %v702
    %v864 = vunpack.c.l.b16 %v703
    %v865 = vunpack.c.h.b16 %v703
    %v866 = vunpack.c.l.b16 %v704
    %v867 = vunpack.c.h.b16 %v704
    %v868 = vunpack.c.l.b16 %v705
    %v869 = vunpack.c.h.b16 %v705
    %v870 = vunpack.c.l.b16 %v706
    %v871 = vunpack.c.h.b16 %v706
    %v872 = vunpack.c.l.b16 %v707
    %v873 = vunpack.c.h.b16 %v707
    %v874 = vunpack.c.l.b16 %v708
    %v875 = vunpack.c.h.b16 %v708
    %v876 = vunpack.c.l.b16 %v709
    %v877 = vunpack.c.h.b16 %v709
    %v878 = vunpack.c.l.b16 %v710
    %v879 = vunpack.c.h.b16 %v710
    %v880 = vunpack.c.l.b16 %v711
    %v881 = vunpack.c.h.b16 %v711
    %v882 = vunpack.c.l.b16 %v712
    %v883 = vunpack.c.h.b16 %v712
    %v884 = vunpack.c.l.b16 %v713
    %v885 = vunpack.c.h.b16 %v713
    %v886 = vunpack.c.l.b16 %v714
    %v887 = vunpack.c.h.b16 %v714
    %v888 = vunpack.c.l.b16 %v715
    %v889 = vunpack.c.h.b16 %v715
    %v890 = vunpack.c.l.b16 %v716
    %v891 = vunpack.c.h.b16 %v716
    %v892 = vunpack.c.l.b16 %v717
    %v893 = vunpack.c.h.b16 %v717
    %v894 = vunpack.c.l.b16 %v718
    %v895 = vunpack.c.h.b16 %v718
    %v896 = vunpack.c.l.b16 %v719
    %v897 = vunpack.c.h.b16 %v719
    %v898 = vunpack.c.l.b16 %v720
    %v899 = vunpack.c.h.b16 %v720
    %v900 = vunpack.c.l.b16 %v721
    %v901 = vunpack.c.h.b16 %v721
    %v902 = vpack.c.b16 %v854, %v838
    %v903 = vpack.c.b16 %v855, %v839
    %v904 = vpack.c.b16 %v856, %v840
    %v905 = vpack.c.b16 %v857, %v841
    %v906 = vpack.c.b16 %v858, %v842
    %v907 = vpack.c.b16 %v859, %v843
    %v908 = vpack.c.b16 %v860, %v844
    %v909 = vpack.c.b16 %v861, %v845
    %v910 = vpack.c.b16 %v862, %v846
    %v911 = vpack.c.b16 %v863, %v847
    %v912 = vpack.c.b16 %v864, %v848
    %v913 = vpack.c.b16 %v865, %v849
    %v914 = vpack.c.b16 %v866, %v850
    %v915 = vpack.c.b16 %v867, %v851
    %v916 = vpack.c.b16 %v868, %v852
    %v917 = vpack.c.b16 %v869, %v853
    %v918 = vpack.c.b16 %v886, %v870
    %v919 = vpack.c.b16 %v887, %v871
    %v920 = vpack.c.b16 %v888, %v872
    %v921 = vpack.c.b16 %v889, %v873
    %v922 = vpack.c.b16 %v890, %v874
    %v923 = vpack.c.b16 %v891, %v875
    %v924 = vpack.c.b16 %v892, %v876
    %v925 = vpack.c.b16 %v893, %v877
    %v926 = vpack.c.b16 %v894, %v878
    %v927 = vpack.c.b16 %v895, %v879
    %v928 = vpack.c.b16 %v896, %v880
    %v929 = vpack.c.b16 %v897, %v881
    %v930 = vpack.c.b16 %v898, %v882
    %v931 = vpack.c.b16 %v899, %v883
    %v932 = vpack.c.b16 %v900, %v884
    %v933 = vpack.c.b16 %v901, %v885
    %v967 = vsel %vm85, %v689, 0
    %969 = vmatprep.subr.bf16.mxu0 %v903
    %970 = vmatpush1.bf16.msra.mxu0 %v902
    %971 = vmatprep.subr.bf16.mxu0 %v919
    %972 = vmatpush1.bf16.msra.mxu0 %v918
    %973 = vmatprep.subr.bf16.mxu0 0
    %974 = vmatpush1.bf16.msra.mxu0 0
    %975 = vmatprep.subr.bf16.mxu0 0
    %976 = vmatpush1.bf16.msra.mxu0 0
    %977 = vmatprep.subr.bf16.mxu0 0
    %978 = vmatpush1.bf16.msra.mxu0 0
    %979 = vmatprep.subr.bf16.mxu0 0
    %980 = vmatpush1.bf16.msra.mxu0 0
    %981 = vmatprep.subr.bf16.mxu0 0
    %982 = vmatpush1.bf16.msra.mxu0 0
    %983 = vmatprep.subr.bf16.mxu0 0
    %984 = vmatpush1.bf16.msra.mxu0 0
    %985 = vmatprep.subr.bf16.mxu0 0
    %986 = vmatpush1.bf16.msra.mxu0 0
    %987 = vmatprep.subr.bf16.mxu0 0
    %988 = vmatpush1.bf16.msra.mxu0 0
    %989 = vmatprep.subr.bf16.mxu0 0
    %990 = vmatpush1.bf16.msra.mxu0 0
    %991 = vmatprep.subr.bf16.mxu0 0
    %992 = vmatpush1.bf16.msra.mxu0 0
    %993 = vmatprep.subr.bf16.mxu0 0
    %994 = vmatpush1.bf16.msra.mxu0 0
    %995 = vmatprep.subr.bf16.mxu0 0
    %996 = vmatpush1.bf16.msra.mxu0 0
    %997 = vmatprep.subr.bf16.mxu0 0
    %998 = vmatpush1.bf16.msra.mxu0 0
    %999 = vmatprep.subr.bf16.mxu0 0
    %1000 = vmatpush1.bf16.msra.mxu0 0
    %1001 = vmatprep.mubr.bf16.mxu0 0
    %1002 = vmatmul.mubr.bf16.gmra.mrb[0].mxu0 %v967
    %v1003 = vpop.f32.mrb[0].mxu0
    %v1004 = vadd.f32 %v729, %v1003
    %v1005 = vpop.f32.mrb[0].mxu0
    %v1006 = vadd.f32 %v733, %v1005
    %v1007 = vpop.f32.mrb[0].mxu0
    %v1008 = vadd.f32 %v729, %v1007
    %v1009 = vpop.f32.mrb[0].mxu0
    %v1010 = vadd.f32 %v733, %v1009
    %1011 = vdwg.mxu0
    %1012 = vmatprep.subr.bf16.mxu0 %v905
    %1013 = vmatpush1.bf16.msra.mxu0 %v904
    %1014 = vmatprep.subr.bf16.mxu0 %v921
    %1015 = vmatpush1.bf16.msra.mxu0 %v920
    %1016 = vmatprep.subr.bf16.mxu0 0
    %1017 = vmatpush1.bf16.msra.mxu0 0
    %1018 = vmatprep.subr.bf16.mxu0 0
    %1019 = vmatpush1.bf16.msra.mxu0 0
    %1020 = vmatprep.subr.bf16.mxu0 0
    %1021 = vmatpush1.bf16.msra.mxu0 0
    %1022 = vmatprep.subr.bf16.mxu0 0
    %1023 = vmatpush1.bf16.msra.mxu0 0
    %1024 = vmatprep.subr.bf16.mxu0 0
    %1025 = vmatpush1.bf16.msra.mxu0 0
    %1026 = vmatprep.subr.bf16.mxu0 0
    %1027 = vmatpush1.bf16.msra.mxu0 0
    %1028 = vmatprep.subr.bf16.mxu0 0
    %1029 = vmatpush1.bf16.msra.mxu0 0
    %1030 = vmatprep.subr.bf16.mxu0 0
    %1031 = vmatpush1.bf16.msra.mxu0 0
    %1032 = vmatprep.subr.bf16.mxu0 0
    %1033 = vmatpush1.bf16.msra.mxu0 0
    %1034 = vmatprep.subr.bf16.mxu0 0
    %1035 = vmatpush1.bf16.msra.mxu0 0
    %1036 = vmatprep.subr.bf16.mxu0 0
    %1037 = vmatpush1.bf16.msra.mxu0 0
    %1038 = vmatprep.subr.bf16.mxu0 0
    %1039 = vmatpush1.bf16.msra.mxu0 0
    %1040 = vmatprep.subr.bf16.mxu0 0
    %1041 = vmatpush1.bf16.msra.mxu0 0
    %1042 = vmatprep.subr.bf16.mxu0 0
    %1043 = vmatpush1.bf16.msra.mxu0 0
    %1044 = vmatprep.mubr.bf16.mxu0 0
    %1045 = vmatmul.mubr.bf16.gmra.mrb[0].mxu0 %v967
    %v1046 = vpop.f32.mrb[0].mxu0
    %v1047 = vadd.f32 %v737, %v1046
    %v1048 = vpop.f32.mrb[0].mxu0
    %v1049 = vadd.f32 %v741, %v1048
    %v1050 = vpop.f32.mrb[0].mxu0
    %v1051 = vadd.f32 %v737, %v1050
    %v1052 = vpop.f32.mrb[0].mxu0
    %v1053 = vadd.f32 %v741, %v1052
    %1054 = vdwg.mxu0
    %1055 = vmatprep.subr.bf16.mxu0 %v907
    %1056 = vmatpush1.bf16.msra.mxu0 %v906
    %1057 = vmatprep.subr.bf16.mxu0 %v923
    %1058 = vmatpush1.bf16.msra.mxu0 %v922
    %1059 = vmatprep.subr.bf16.mxu0 0
    %1060 = vmatpush1.bf16.msra.mxu0 0
    %1061 = vmatprep.subr.bf16.mxu0 0
    %1062 = vmatpush1.bf16.msra.mxu0 0
    %1063 = vmatprep.subr.bf16.mxu0 0
    %1064 = vmatpush1.bf16.msra.mxu0 0
    %1065 = vmatprep.subr.bf16.mxu0 0
    %1066 = vmatpush1.bf16.msra.mxu0 0
    %1067 = vmatprep.subr.bf16.mxu0 0
    %1068 = vmatpush1.bf16.msra.mxu0 0
    %1069 = vmatprep.subr.bf16.mxu0 0
    %1070 = vmatpush1.bf16.msra.mxu0 0
    %1071 = vmatprep.subr.bf16.mxu0 0
    %1072 = vmatpush1.bf16.msra.mxu0 0
    %1073 = vmatprep.subr.bf16.mxu0 0
    %1074 = vmatpush1.bf16.msra.mxu0 0
    %1075 = vmatprep.subr.bf16.mxu0 0
    %1076 = vmatpush1.bf16.msra.mxu0 0
    %1077 = vmatprep.subr.bf16.mxu0 0
    %1078 = vmatpush1.bf16.msra.mxu0 0
    %1079 = vmatprep.subr.bf16.mxu0 0
    %1080 = vmatpush1.bf16.msra.mxu0 0
    %1081 = vmatprep.subr.bf16.mxu0 0
    %1082 = vmatpush1.bf16.msra.mxu0 0
    %1083 = vmatprep.subr.bf16.mxu0 0
    %1084 = vmatpush1.bf16.msra.mxu0 0
    %1085 = vmatprep.subr.bf16.mxu0 0
    %1086 = vmatpush1.bf16.msra.mxu0 0
    %1087 = vmatprep.mubr.bf16.mxu0 0
    %1088 = vmatmul.mubr.bf16.gmra.mrb[0].mxu0 %v967
    %v1089 = vpop.f32.mrb[0].mxu0
    %v1090 = vadd.f32 %v745, %v1089
    %v1091 = vpop.f32.mrb[0].mxu0
    %v1092 = vadd.f32 %v749, %v1091
    %v1093 = vpop.f32.mrb[0].mxu0
    %v1094 = vadd.f32 %v745, %v1093
    %v1095 = vpop.f32.mrb[0].mxu0
    %v1096 = vadd.f32 %v749, %v1095
    %1097 = vdwg.mxu0
    %1098 = vmatprep.subr.bf16.mxu0 %v909
    %1099 = vmatpush1.bf16.msra.mxu0 %v908
    %1100 = vmatprep.subr.bf16.mxu0 %v925
    %1101 = vmatpush1.bf16.msra.mxu0 %v924
    %1102 = vmatprep.subr.bf16.mxu0 0
    %1103 = vmatpush1.bf16.msra.mxu0 0
    %1104 = vmatprep.subr.bf16.mxu0 0
    %1105 = vmatpush1.bf16.msra.mxu0 0
    %1106 = vmatprep.subr.bf16.mxu0 0
    %1107 = vmatpush1.bf16.msra.mxu0 0
    %1108 = vmatprep.subr.bf16.mxu0 0
    %1109 = vmatpush1.bf16.msra.mxu0 0
    %1110 = vmatprep.subr.bf16.mxu0 0
    %1111 = vmatpush1.bf16.msra.mxu0 0
    %1112 = vmatprep.subr.bf16.mxu0 0
    %1113 = vmatpush1.bf16.msra.mxu0 0
    %1114 = vmatprep.subr.bf16.mxu0 0
    %1115 = vmatpush1.bf16.msra.mxu0 0
    %1116 = vmatprep.subr.bf16.mxu0 0
    %1117 = vmatpush1.bf16.msra.mxu0 0
    %1118 = vmatprep.subr.bf16.mxu0 0
    %1119 = vmatpush1.bf16.msra.mxu0 0
    %1120 = vmatprep.subr.bf16.mxu0 0
    %1121 = vmatpush1.bf16.msra.mxu0 0
    %1122 = vmatprep.subr.bf16.mxu0 0
    %1123 = vmatpush1.bf16.msra.mxu0 0
    %1124 = vmatprep.subr.bf16.mxu0 0
    %1125 = vmatpush1.bf16.msra.mxu0 0
    %1126 = vmatprep.subr.bf16.mxu0 0
    %1127 = vmatpush1.bf16.msra.mxu0 0
    %1128 = vmatprep.subr.bf16.mxu0 0
    %1129 = vmatpush1.bf16.msra.mxu0 0
    %1130 = vmatprep.mubr.bf16.mxu0 0
    %1131 = vmatmul.mubr.bf16.gmra.mrb[0].mxu0 %v967
    %v1132 = vpop.f32.mrb[0].mxu0
    %v1133 = vadd.f32 %v753, %v1132
    %v1134 = vpop.f32.mrb[0].mxu0
    %v1135 = vadd.f32 %v757, %v1134
    %v1136 = vpop.f32.mrb[0].mxu0
    %v1137 = vadd.f32 %v753, %v1136
    %v1138 = vpop.f32.mrb[0].mxu0
    %v1139 = vadd.f32 %v757, %v1138
    %1140 = vdwg.mxu0
    %1141 = vmatprep.subr.bf16.mxu0 %v911
    %1142 = vmatpush1.bf16.msra.mxu0 %v910
    %1143 = vmatprep.subr.bf16.mxu0 %v927
    %1144 = vmatpush1.bf16.msra.mxu0 %v926
    %1145 = vmatprep.subr.bf16.mxu0 0
    %1146 = vmatpush1.bf16.msra.mxu0 0
    %1147 = vmatprep.subr.bf16.mxu0 0
    %1148 = vmatpush1.bf16.msra.mxu0 0
    %1149 = vmatprep.subr.bf16.mxu0 0
    %1150 = vmatpush1.bf16.msra.mxu0 0
    %1151 = vmatprep.subr.bf16.mxu0 0
    %1152 = vmatpush1.bf16.msra.mxu0 0
    %1153 = vmatprep.subr.bf16.mxu0 0
    %1154 = vmatpush1.bf16.msra.mxu0 0
    %1155 = vmatprep.subr.bf16.mxu0 0
    %1156 = vmatpush1.bf16.msra.mxu0 0
    %1157 = vmatprep.subr.bf16.mxu0 0
    %1158 = vmatpush1.bf16.msra.mxu0 0
    %1159 = vmatprep.subr.bf16.mxu0 0
    %1160 = vmatpush1.bf16.msra.mxu0 0
    %1161 = vmatprep.subr.bf16.mxu0 0
    %1162 = vmatpush1.bf16.msra.mxu0 0
    %1163 = vmatprep.subr.bf16.mxu0 0
    %1164 = vmatpush1.bf16.msra.mxu0 0
    %1165 = vmatprep.subr.bf16.mxu0 0
    %1166 = vmatpush1.bf16.msra.mxu0 0
    %1167 = vmatprep.subr.bf16.mxu0 0
    %1168 = vmatpush1.bf16.msra.mxu0 0
    %1169 = vmatprep.subr.bf16.mxu0 0
    %1170 = vmatpush1.bf16.msra.mxu0 0
    %1171 = vmatprep.subr.bf16.mxu0 0
    %1172 = vmatpush1.bf16.msra.mxu0 0
    %1173 = vmatprep.mubr.bf16.mxu0 0
    %1174 = vmatmul.mubr.bf16.gmra.mrb[0].mxu0 %v967
    %v1175 = vpop.f32.mrb[0].mxu0
    %v1176 = vadd.f32 %v761, %v1175
    %v1177 = vpop.f32.mrb[0].mxu0
    %v1178 = vadd.f32 %v765, %v1177
    %v1179 = vpop.f32.mrb[0].mxu0
    %v1180 = vadd.f32 %v761, %v1179
    %v1181 = vpop.f32.mrb[0].mxu0
    %v1182 = vadd.f32 %v765, %v1181
    %1183 = vdwg.mxu0
    %1184 = vmatprep.subr.bf16.mxu0 %v913
    %1185 = vmatpush1.bf16.msra.mxu0 %v912
    %1186 = vmatprep.subr.bf16.mxu0 %v929
    %1187 = vmatpush1.bf16.msra.mxu0 %v928
    %1188 = vmatprep.subr.bf16.mxu0 0
    %1189 = vmatpush1.bf16.msra.mxu0 0
    %1190 = vmatprep.subr.bf16.mxu0 0
    %1191 = vmatpush1.bf16.msra.mxu0 0
    %1192 = vmatprep.subr.bf16.mxu0 0
    %1193 = vmatpush1.bf16.msra.mxu0 0
    %1194 = vmatprep.subr.bf16.mxu0 0
    %1195 = vmatpush1.bf16.msra.mxu0 0
    %1196 = vmatprep.subr.bf16.mxu0 0
    %1197 = vmatpush1.bf16.msra.mxu0 0
    %1198 = vmatprep.subr.bf16.mxu0 0
    %1199 = vmatpush1.bf16.msra.mxu0 0
    %1200 = vmatprep.subr.bf16.mxu0 0
    %1201 = vmatpush1.bf16.msra.mxu0 0
    %1202 = vmatprep.subr.bf16.mxu0 0
    %1203 = vmatpush1.bf16.msra.mxu0 0
    %1204 = vmatprep.subr.bf16.mxu0 0
    %1205 = vmatpush1.bf16.msra.mxu0 0
    %1206 = vmatprep.subr.bf16.mxu0 0
    %1207 = vmatpush1.bf16.msra.mxu0 0
    %1208 = vmatprep.subr.bf16.mxu0 0
    %1209 = vmatpush1.bf16.msra.mxu0 0
    %1210 = vmatprep.subr.bf16.mxu0 0
    %1211 = vmatpush1.bf16.msra.mxu0 0
    %1212 = vmatprep.subr.bf16.mxu0 0
    %1213 = vmatpush1.bf16.msra.mxu0 0
    %1214 = vmatprep.subr.bf16.mxu0 0
    %1215 = vmatpush1.bf16.msra.mxu0 0
    %1216 = vmatprep.mubr.bf16.mxu0 0
    %1217 = vmatmul.mubr.bf16.gmra.mrb[0].mxu0 %v967
    %v1218 = vpop.f32.mrb[0].mxu0
    %v1219 = vadd.f32 %v769, %v1218
    %v1220 = vpop.f32.mrb[0].mxu0
    %v1221 = vadd.f32 %v773, %v1220
    %v1222 = vpop.f32.mrb[0].mxu0
    %v1223 = vadd.f32 %v769, %v1222
    %v1224 = vpop.f32.mrb[0].mxu0
    %v1225 = vadd.f32 %v773, %v1224
    %1226 = vdwg.mxu0
    %1227 = vmatprep.subr.bf16.mxu0 %v915
    %1228 = vmatpush1.bf16.msra.mxu0 %v914
    %1229 = vmatprep.subr.bf16.mxu0 %v931
    %1230 = vmatpush1.bf16.msra.mxu0 %v930
    %1231 = vmatprep.subr.bf16.mxu0 0
    %1232 = vmatpush1.bf16.msra.mxu0 0
    %1233 = vmatprep.subr.bf16.mxu0 0
    %1234 = vmatpush1.bf16.msra.mxu0 0
    %1235 = vmatprep.subr.bf16.mxu0 0
    %1236 = vmatpush1.bf16.msra.mxu0 0
    %1237 = vmatprep.subr.bf16.mxu0 0
    %1238 = vmatpush1.bf16.msra.mxu0 0
    %1239 = vmatprep.subr.bf16.mxu0 0
    %1240 = vmatpush1.bf16.msra.mxu0 0
    %1241 = vmatprep.subr.bf16.mxu0 0
    %1242 = vmatpush1.bf16.msra.mxu0 0
    %1243 = vmatprep.subr.bf16.mxu0 0
    %1244 = vmatpush1.bf16.msra.mxu0 0
    %1245 = vmatprep.subr.bf16.mxu0 0
    %1246 = vmatpush1.bf16.msra.mxu0 0
    %1247 = vmatprep.subr.bf16.mxu0 0
    %1248 = vmatpush1.bf16.msra.mxu0 0
    %1249 = vmatprep.subr.bf16.mxu0 0
    %1250 = vmatpush1.bf16.msra.mxu0 0
    %1251 = vmatprep.subr.bf16.mxu0 0
    %1252 = vmatpush1.bf16.msra.mxu0 0
    %1253 = vmatprep.subr.bf16.mxu0 0
    %1254 = vmatpush1.bf16.msra.mxu0 0
    %1255 = vmatprep.subr.bf16.mxu0 0
    %1256 = vmatpush1.bf16.msra.mxu0 0
    %1257 = vmatprep.subr.bf16.mxu0 0
    %1258 = vmatpush1.bf16.msra.mxu0 0
    %1259 = vmatprep.mubr.bf16.mxu0 0
    %1260 = vmatmul.mubr.bf16.gmra.mrb[0].mxu0 %v967
    %v1261 = vpop.f32.mrb[0].mxu0
    %v1262 = vadd.f32 %v777, %v1261
    %v1263 = vpop.f32.mrb[0].mxu0
    %v1264 = vadd.f32 %v781, %v1263
    %v1265 = vpop.f32.mrb[0].mxu0
    %v1266 = vadd.f32 %v777, %v1265
    %v1267 = vpop.f32.mrb[0].mxu0
    %v1268 = vadd.f32 %v781, %v1267
    %1269 = vdwg.mxu0
    %1270 = vmatprep.subr.bf16.mxu0 %v917
    %1271 = vmatpush1.bf16.msra.mxu0 %v916
    %1272 = vmatprep.subr.bf16.mxu0 %v933
    %1273 = vmatpush1.bf16.msra.mxu0 %v932
    %1274 = vmatprep.subr.bf16.mxu0 0
    %1275 = vmatpush1.bf16.msra.mxu0 0
    %1276 = vmatprep.subr.bf16.mxu0 0
    %1277 = vmatpush1.bf16.msra.mxu0 0
    %1278 = vmatprep.subr.bf16.mxu0 0
    %1279 = vmatpush1.bf16.msra.mxu0 0
    %1280 = vmatprep.subr.bf16.mxu0 0
    %1281 = vmatpush1.bf16.msra.mxu0 0
    %1282 = vmatprep.subr.bf16.mxu0 0
    %1283 = vmatpush1.bf16.msra.mxu0 0
    %1284 = vmatprep.subr.bf16.mxu0 0
    %1285 = vmatpush1.bf16.msra.mxu0 0
    %1286 = vmatprep.subr.bf16.mxu0 0
    %1287 = vmatpush1.bf16.msra.mxu0 0
    %1288 = vmatprep.subr.bf16.mxu0 0
    %1289 = vmatpush1.bf16.msra.mxu0 0
    %1290 = vmatprep.subr.bf16.mxu0 0
    %1291 = vmatpush1.bf16.msra.mxu0 0
    %1292 = vmatprep.subr.bf16.mxu0 0
    %1293 = vmatpush1.bf16.msra.mxu0 0
    %1294 = vmatprep.subr.bf16.mxu0 0
    %1295 = vmatpush1.bf16.msra.mxu0 0
    %1296 = vmatprep.subr.bf16.mxu0 0
    %1297 = vmatpush1.bf16.msra.mxu0 0
    %1298 = vmatprep.subr.bf16.mxu0 0
    %1299 = vmatpush1.bf16.msra.mxu0 0
    %1300 = vmatprep.subr.bf16.mxu0 0
    %1301 = vmatpush1.bf16.msra.mxu0 0
    %1302 = vmatprep.mubr.bf16.mxu0 0
    %1303 = vmatmul.mubr.bf16.gmra.mrb[0].mxu0 %v967
    %v1304 = vpop.f32.mrb[0].mxu0
    %v1305 = vadd.f32 %v785, %v1304
    %v1306 = vpop.f32.mrb[0].mxu0
    %v1307 = vadd.f32 %v789, %v1306
    %v1308 = vpop.f32.mrb[0].mxu0
    %v1309 = vadd.f32 %v785, %v1308
    %v1310 = vpop.f32.mrb[0].mxu0
    %v1311 = vadd.f32 %v789, %v1310
    %1312 = vdwg.mxu0
    %v1313 = vmax.f32 %v1004, 0.0
    %v1314 = vmax.f32 %v1006, 0.0
    %v1315 = vmax.f32 %v1047, 0.0
    %v1316 = vmax.f32 %v1049, 0.0
    %v1317 = vmax.f32 %v1090, 0.0
    %v1318 = vmax.f32 %v1092, 0.0
    %v1319 = vmax.f32 %v1133, 0.0
    %v1320 = vmax.f32 %v1135, 0.0
    %v1321 = vmax.f32 %v1176, 0.0
    %v1322 = vmax.f32 %v1178, 0.0
    %v1323 = vmax.f32 %v1219, 0.0
    %v1324 = vmax.f32 %v1221, 0.0
    %v1325 = vmax.f32 %v1262, 0.0
    %v1326 = vmax.f32 %v1264, 0.0
    %v1327 = vmax.f32 %v1305, 0.0
    %v1328 = vmax.f32 %v1307, 0.0
    %v1329 = vmax.f32 %v1008, 0.0
    %v1330 = vmax.f32 %v1010, 0.0
    %v1331 = vmax.f32 %v1051, 0.0
    %v1332 = vmax.f32 %v1053, 0.0
    %v1333 = vmax.f32 %v1094, 0.0
    %v1334 = vmax.f32 %v1096, 0.0
    %v1335 = vmax.f32 %v1137, 0.0
    %v1336 = vmax.f32 %v1139, 0.0
    %v1337 = vmax.f32 %v1180, 0.0
    %v1338 = vmax.f32 %v1182, 0.0
    %v1339 = vmax.f32 %v1223, 0.0
    %v1340 = vmax.f32 %v1225, 0.0
    %v1341 = vmax.f32 %v1266, 0.0
    %v1342 = vmax.f32 %v1268, 0.0
    %v1343 = vmax.f32 %v1309, 0.0
    %v1344 = vmax.f32 %v1311, 0.0
    %v1345 = vpack.c.bf16 %v1329, %v1313
    %v1346 = vpack.c.bf16 %v1330, %v1314
    %v1347 = vpack.c.bf16 %v1331, %v1315
    %v1348 = vpack.c.bf16 %v1332, %v1316
    %v1349 = vpack.c.bf16 %v1333, %v1317
    %v1350 = vpack.c.bf16 %v1334, %v1318
    %v1351 = vpack.c.bf16 %v1335, %v1319
    %v1352 = vpack.c.bf16 %v1336, %v1320
    %v1353 = vpack.c.bf16 %v1337, %v1321
    %v1354 = vpack.c.bf16 %v1338, %v1322
    %v1355 = vpack.c.bf16 %v1339, %v1323
    %v1356 = vpack.c.bf16 %v1340, %v1324
    %v1357 = vpack.c.bf16 %v1341, %v1325
    %v1358 = vpack.c.bf16 %v1342, %v1326
    %v1359 = vpack.c.bf16 %v1343, %v1327
    %v1360 = vpack.c.bf16 %v1344, %v1328
    %v1361 = vld [vmem:[#allocation6] sm:$0xff]
    %v1362 = vld [vmem:[#allocation6 + $0x8] sm:$0xff]
    %v1363 = vld [vmem:[#allocation6 + $0x10] sm:$0xff]
    %v1364 = vld [vmem:[#allocation6 + $0x18] sm:$0xff]
    %v1365 = vld [vmem:[#allocation6 + $0x20] sm:$0xff]
    %v1366 = vld [vmem:[#allocation6 + $0x28] sm:$0xff]
    %v1367 = vld [vmem:[#allocation6 + $0x30] sm:$0xff]
    %v1368 = vld [vmem:[#allocation6 + $0x38] sm:$0xff]
    %v1369 = vld [vmem:[#allocation6 + $0x40] sm:$0xff]
    %v1370 = vld [vmem:[#allocation6 + $0x48] sm:$0xff]
    %v1371 = vld [vmem:[#allocation6 + $0x50] sm:$0xff]
    %v1372 = vld [vmem:[#allocation6 + $0x58] sm:$0xff]
    %v1373 = vld [vmem:[#allocation6 + $0x60] sm:$0xff]
    %v1374 = vld [vmem:[#allocation6 + $0x68] sm:$0xff]
    %v1375 = vld [vmem:[#allocation6 + $0x70] sm:$0xff]
    %v1376 = vld [vmem:[#allocation6 + $0x78] sm:$0xff]
    %v1377 = vld [vmem:[#allocation6 + $0x80] sm:$0xff]
    %v1378 = vld [vmem:[#allocation6 + $0x88] sm:$0xff]
    %v1379 = vld [vmem:[#allocation6 + $0x90] sm:$0xff]
    %v1380 = vld [vmem:[#allocation6 + $0x98] sm:$0xff]
    %v1381 = vld [vmem:[#allocation6 + $0xa0] sm:$0xff]
    %v1382 = vld [vmem:[#allocation6 + $0xa8] sm:$0xff]
    %v1383 = vld [vmem:[#allocation6 + $0xb0] sm:$0xff]
    %v1384 = vld [vmem:[#allocation6 + $0xb8] sm:$0xff]
    %v1385 = vld [vmem:[#allocation6 + $0xc0] sm:$0xff]
    %v1386 = vld [vmem:[#allocation6 + $0xc8] sm:$0xff]
    %v1387 = vld [vmem:[#allocation6 + $0xd0] sm:$0xff]
    %v1388 = vld [vmem:[#allocation6 + $0xd8] sm:$0xff]
    %v1389 = vld [vmem:[#allocation6 + $0xe0] sm:$0xff]
    %v1390 = vld [vmem:[#allocation6 + $0xe8] sm:$0xff]
    %v1391 = vld [vmem:[#allocation6 + $0xf0] sm:$0xff]
    %v1392 = vld [vmem:[#allocation6 + $0xf8] sm:$0xff]
    %v1393 = vld [vmem:[#allocation2 + $0x87] sm:$0x1]
    %v1394 = vlaneseq
    %v1395 = vshrl.u32 %v1394, 7
    %v1396 = vsub.s32 0, %v1395
    %v1397 = vrot.slane %v1393, %v1396
    %v1430 = vunpack.c.l.b16 %v1361
    %v1431 = vunpack.c.h.b16 %v1361
    %v1432 = vunpack.c.l.b16 %v1362
    %v1433 = vunpack.c.h.b16 %v1362
    %v1434 = vunpack.c.l.b16 %v1363
    %v1435 = vunpack.c.h.b16 %v1363
    %v1436 = vunpack.c.l.b16 %v1364
    %v1437 = vunpack.c.h.b16 %v1364
    %v1438 = vunpack.c.l.b16 %v1365
    %v1439 = vunpack.c.h.b16 %v1365
    %v1440 = vunpack.c.l.b16 %v1366
    %v1441 = vunpack.c.h.b16 %v1366
    %v1442 = vunpack.c.l.b16 %v1367
    %v1443 = vunpack.c.h.b16 %v1367
    %v1444 = vunpack.c.l.b16 %v1368
    %v1445 = vunpack.c.h.b16 %v1368
    %v1446 = vunpack.c.l.b16 %v1369
    %v1447 = vunpack.c.h.b16 %v1369
    %v1448 = vunpack.c.l.b16 %v1370
    %v1449 = vunpack.c.h.b16 %v1370
    %v1450 = vunpack.c.l.b16 %v1371
    %v1451 = vunpack.c.h.b16 %v1371
    %v1452 = vunpack.c.l.b16 %v1372
    %v1453 = vunpack.c.h.b16 %v1372
    %v1454 = vunpack.c.l.b16 %v1373
    %v1455 = vunpack.c.h.b16 %v1373
    %v1456 = vunpack.c.l.b16 %v1374
    %v1457 = vunpack.c.h.b16 %v1374
    %v1458 = vunpack.c.l.b16 %v1375
    %v1459 = vunpack.c.h.b16 %v1375
    %v1460 = vunpack.c.l.b16 %v1376
    %v1461 = vunpack.c.h.b16 %v1376
    %v1462 = vunpack.c.l.b16 %v1377
    %v1463 = vunpack.c.h.b16 %v1377
    %v1464 = vunpack.c.l.b16 %v1378
    %v1465 = vunpack.c.h.b16 %v1378
    %v1466 = vunpack.c.l.b16 %v1379
    %v1467 = vunpack.c.h.b16 %v1379
    %v1468 = vunpack.c.l.b16 %v1380
    %v1469 = vunpack.c.h.b16 %v1380
    %v1470 = vunpack.c.l.b16 %v1381
    %v1471 = vunpack.c.h.b16 %v1381
    %v1472 = vunpack.c.l.b16 %v1382
    %v1473 = vunpack.c.h.b16 %v1382
    %v1474 = vunpack.c.l.b16 %v1383
    %v1475 = vunpack.c.h.b16 %v1383
    %v1476 = vunpack.c.l.b16 %v1384
    %v1477 = vunpack.c.h.b16 %v1384
    %v1478 = vunpack.c.l.b16 %v1385
    %v1479 = vunpack.c.h.b16 %v1385
    %v1480 = vunpack.c.l.b16 %v1386
    %v1481 = vunpack.c.h.b16 %v1386
    %v1482 = vunpack.c.l.b16 %v1387
    %v1483 = vunpack.c.h.b16 %v1387
    %v1484 = vunpack.c.l.b16 %v1388
    %v1485 = vunpack.c.h.b16 %v1388
    %v1486 = vunpack.c.l.b16 %v1389
    %v1487 = vunpack.c.h.b16 %v1389
    %v1488 = vunpack.c.l.b16 %v1390
    %v1489 = vunpack.c.h.b16 %v1390
    %v1490 = vunpack.c.l.b16 %v1391
    %v1491 = vunpack.c.h.b16 %v1391
    %v1492 = vunpack.c.l.b16 %v1392
    %v1493 = vunpack.c.h.b16 %v1392
    %v1494 = vpack.c.b16 %v1446, %v1430
    %v1495 = vpack.c.b16 %v1447, %v1431
    %v1496 = vpack.c.b16 %v1448, %v1432
    %v1497 = vpack.c.b16 %v1449, %v1433
    %v1498 = vpack.c.b16 %v1450, %v1434
    %v1499 = vpack.c.b16 %v1451, %v1435
    %v1500 = vpack.c.b16 %v1452, %v1436
    %v1501 = vpack.c.b16 %v1453, %v1437
    %v1502 = vpack.c.b16 %v1454, %v1438
    %v1503 = vpack.c.b16 %v1455, %v1439
    %v1504 = vpack.c.b16 %v1456, %v1440
    %v1505 = vpack.c.b16 %v1457, %v1441
    %v1506 = vpack.c.b16 %v1458, %v1442
    %v1507 = vpack.c.b16 %v1459, %v1443
    %v1508 = vpack.c.b16 %v1460, %v1444
    %v1509 = vpack.c.b16 %v1461, %v1445
    %v1510 = vpack.c.b16 %v1478, %v1462
    %v1511 = vpack.c.b16 %v1479, %v1463
    %v1512 = vpack.c.b16 %v1480, %v1464
    %v1513 = vpack.c.b16 %v1481, %v1465
    %v1514 = vpack.c.b16 %v1482, %v1466
    %v1515 = vpack.c.b16 %v1483, %v1467
    %v1516 = vpack.c.b16 %v1484, %v1468
    %v1517 = vpack.c.b16 %v1485, %v1469
    %v1518 = vpack.c.b16 %v1486, %v1470
    %v1519 = vpack.c.b16 %v1487, %v1471
    %v1520 = vpack.c.b16 %v1488, %v1472
    %v1521 = vpack.c.b16 %v1489, %v1473
    %v1522 = vpack.c.b16 %v1490, %v1474
    %v1523 = vpack.c.b16 %v1491, %v1475
    %v1524 = vpack.c.b16 %v1492, %v1476
    %v1525 = vpack.c.b16 %v1493, %v1477
    %1558 = vmatprep.subr.bf16.mxu0 %v1495
    %1559 = vmatpush1.bf16.xpose.msra.mxu0 %v1494
    %1560 = vmatprep.subr.bf16.mxu0 %v1511
    %1561 = vmatpush1.bf16.xpose.msra.mxu0 %v1510
    %1562 = vmatprep.subr.bf16.mxu0 0
    %1563 = vmatpush1.bf16.xpose.msra.mxu0 0
    %1564 = vmatprep.subr.bf16.mxu0 0
    %1565 = vmatpush1.bf16.xpose.msra.mxu0 0
    %1566 = vmatprep.subr.bf16.mxu0 0
    %1567 = vmatpush1.bf16.xpose.msra.mxu0 0
    %1568 = vmatprep.subr.bf16.mxu0 0
    %1569 = vmatpush1.bf16.xpose.msra.mxu0 0
    %1570 = vmatprep.subr.bf16.mxu0 0
    %1571 = vmatpush1.bf16.xpose.msra.mxu0 0
    %1572 = vmatprep.subr.bf16.mxu0 0
    %1573 = vmatpush1.bf16.xpose.msra.mxu0 0
    %1574 = vmatprep.subr.bf16.mxu0 0
    %1575 = vmatpush1.bf16.xpose.msra.mxu0 0
    %1576 = vmatprep.subr.bf16.mxu0 0
    %1577 = vmatpush1.bf16.xpose.msra.mxu0 0
    %1578 = vmatprep.subr.bf16.mxu0 0
    %1579 = vmatpush1.bf16.xpose.msra.mxu0 0
    %1580 = vmatprep.subr.bf16.mxu0 0
    %1581 = vmatpush1.bf16.xpose.msra.mxu0 0
    %1582 = vmatprep.subr.bf16.mxu0 0
    %1583 = vmatpush1.bf16.xpose.msra.mxu0 0
    %1584 = vmatprep.subr.bf16.mxu0 0
    %1585 = vmatpush1.bf16.xpose.msra.mxu0 0
    %1586 = vmatprep.subr.bf16.mxu0 0
    %1587 = vmatpush1.bf16.xpose.msra.mxu0 0
    %1588 = vmatprep.subr.bf16.mxu0 0
    %1589 = vmatpush1.bf16.xpose.msra.mxu0 0
    %1590 = vmatprep.mubr.bf16.mxu0 %v1346
    %1591 = vmatmul.mubr.bf16.gmra.mrb[0].mxu0 %v1345
    %v1592 = vpop.f32.mrb[0].mxu0
    %v1593 = vadd.f32 %v1397, %v1592
    %v1594 = vpop.f32.mrb[0].mxu0
    %v1595 = vpop.f32.mrb[0].mxu0
    %v1596 = vadd.f32 %v1397, %v1595
    %v1597 = vpop.f32.mrb[0].mxu0
    %1598 = vdwg.mxu0
    %1599 = vmatprep.subr.bf16.mxu0 %v1497
    %1600 = vmatpush1.bf16.xpose.msra.mxu0 %v1496
    %1601 = vmatprep.subr.bf16.mxu0 %v1513
    %1602 = vmatpush1.bf16.xpose.msra.mxu0 %v1512
    %1603 = vmatprep.subr.bf16.mxu0 0
    %1604 = vmatpush1.bf16.xpose.msra.mxu0 0
    %1605 = vmatprep.subr.bf16.mxu0 0
    %1606 = vmatpush1.bf16.xpose.msra.mxu0 0
    %1607 = vmatprep.subr.bf16.mxu0 0
    %1608 = vmatpush1.bf16.xpose.msra.mxu0 0
    %1609 = vmatprep.subr.bf16.mxu0 0
    %1610 = vmatpush1.bf16.xpose.msra.mxu0 0
    %1611 = vmatprep.subr.bf16.mxu0 0
    %1612 = vmatpush1.bf16.xpose.msra.mxu0 0
    %1613 = vmatprep.subr.bf16.mxu0 0
    %1614 = vmatpush1.bf16.xpose.msra.mxu0 0
    %1615 = vmatprep.subr.bf16.mxu0 0
    %1616 = vmatpush1.bf16.xpose.msra.mxu0 0
    %1617 = vmatprep.subr.bf16.mxu0 0
    %1618 = vmatpush1.bf16.xpose.msra.mxu0 0
    %1619 = vmatprep.subr.bf16.mxu0 0
    %1620 = vmatpush1.bf16.xpose.msra.mxu0 0
    %1621 = vmatprep.subr.bf16.mxu0 0
    %1622 = vmatpush1.bf16.xpose.msra.mxu0 0
    %1623 = vmatprep.subr.bf16.mxu0 0
    %1624 = vmatpush1.bf16.xpose.msra.mxu0 0
    %1625 = vmatprep.subr.bf16.mxu0 0
    %1626 = vmatpush1.bf16.xpose.msra.mxu0 0
    %1627 = vmatprep.subr.bf16.mxu0 0
    %1628 = vmatpush1.bf16.xpose.msra.mxu0 0
    %1629 = vmatprep.subr.bf16.mxu0 0
    %1630 = vmatpush1.bf16.xpose.msra.mxu0 0
    %1631 = vmatprep.mubr.bf16.mxu0 %v1348
    %1632 = vmatmul.mubr.bf16.gmra.mrb[0].mxu0 %v1347
    %v1633 = vpop.f32.mrb[0].mxu0
    %v1634 = vadd.f32 %v1593, %v1633
    %v1635 = vpop.f32.mrb[0].mxu0
    %v1636 = vpop.f32.mrb[0].mxu0
    %v1637 = vadd.f32 %v1596, %v1636
    %v1638 = vpop.f32.mrb[0].mxu0
    %1639 = vdwg.mxu0
    %1640 = vmatprep.subr.bf16.mxu0 %v1499
    %1641 = vmatpush1.bf16.xpose.msra.mxu0 %v1498
    %1642 = vmatprep.subr.bf16.mxu0 %v1515
    %1643 = vmatpush1.bf16.xpose.msra.mxu0 %v1514
    %1644 = vmatprep.subr.bf16.mxu0 0
    %1645 = vmatpush1.bf16.xpose.msra.mxu0 0
    %1646 = vmatprep.subr.bf16.mxu0 0
    %1647 = vmatpush1.bf16.xpose.msra.mxu0 0
    %1648 = vmatprep.subr.bf16.mxu0 0
    %1649 = vmatpush1.bf16.xpose.msra.mxu0 0
    %1650 = vmatprep.subr.bf16.mxu0 0
    %1651 = vmatpush1.bf16.xpose.msra.mxu0 0
    %1652 = vmatprep.subr.bf16.mxu0 0
    %1653 = vmatpush1.bf16.xpose.msra.mxu0 0
    %1654 = vmatprep.subr.bf16.mxu0 0
    %1655 = vmatpush1.bf16.xpose.msra.mxu0 0
    %1656 = vmatprep.subr.bf16.mxu0 0
    %1657 = vmatpush1.bf16.xpose.msra.mxu0 0
    %1658 = vmatprep.subr.bf16.mxu0 0
    %1659 = vmatpush1.bf16.xpose.msra.mxu0 0
    %1660 = vmatprep.subr.bf16.mxu0 0
    %1661 = vmatpush1.bf16.xpose.msra.mxu0 0
    %1662 = vmatprep.subr.bf16.mxu0 0
    %1663 = vmatpush1.bf16.xpose.msra.mxu0 0
    %1664 = vmatprep.subr.bf16.mxu0 0
    %1665 = vmatpush1.bf16.xpose.msra.mxu0 0
    %1666 = vmatprep.subr.bf16.mxu0 0
    %1667 = vmatpush1.bf16.xpose.msra.mxu0 0
    %1668 = vmatprep.subr.bf16.mxu0 0
    %1669 = vmatpush1.bf16.xpose.msra.mxu0 0
    %1670 = vmatprep.subr.bf16.mxu0 0
    %1671 = vmatpush1.bf16.xpose.msra.mxu0 0
    %1672 = vmatprep.mubr.bf16.mxu0 %v1350
    %1673 = vmatmul.mubr.bf16.gmra.mrb[0].mxu0 %v1349
    %v1674 = vpop.f32.mrb[0].mxu0
    %v1675 = vadd.f32 %v1634, %v1674
    %v1676 = vpop.f32.mrb[0].mxu0
    %v1677 = vpop.f32.mrb[0].mxu0
    %v1678 = vadd.f32 %v1637, %v1677
    %v1679 = vpop.f32.mrb[0].mxu0
    %1680 = vdwg.mxu0
    %1681 = vmatprep.subr.bf16.mxu0 %v1501
    %1682 = vmatpush1.bf16.xpose.msra.mxu0 %v1500
    %1683 = vmatprep.subr.bf16.mxu0 %v1517
    %1684 = vmatpush1.bf16.xpose.msra.mxu0 %v1516
    %1685 = vmatprep.subr.bf16.mxu0 0
    %1686 = vmatpush1.bf16.xpose.msra.mxu0 0
    %1687 = vmatprep.subr.bf16.mxu0 0
    %1688 = vmatpush1.bf16.xpose.msra.mxu0 0
    %1689 = vmatprep.subr.bf16.mxu0 0
    %1690 = vmatpush1.bf16.xpose.msra.mxu0 0
    %1691 = vmatprep.subr.bf16.mxu0 0
    %1692 = vmatpush1.bf16.xpose.msra.mxu0 0
    %1693 = vmatprep.subr.bf16.mxu0 0
    %1694 = vmatpush1.bf16.xpose.msra.mxu0 0
    %1695 = vmatprep.subr.bf16.mxu0 0
    %1696 = vmatpush1.bf16.xpose.msra.mxu0 0
    %1697 = vmatprep.subr.bf16.mxu0 0
    %1698 = vmatpush1.bf16.xpose.msra.mxu0 0
    %1699 = vmatprep.subr.bf16.mxu0 0
    %1700 = vmatpush1.bf16.xpose.msra.mxu0 0
    %1701 = vmatprep.subr.bf16.mxu0 0
    %1702 = vmatpush1.bf16.xpose.msra.mxu0 0
    %1703 = vmatprep.subr.bf16.mxu0 0
    %1704 = vmatpush1.bf16.xpose.msra.mxu0 0
    %1705 = vmatprep.subr.bf16.mxu0 0
    %1706 = vmatpush1.bf16.xpose.msra.mxu0 0
    %1707 = vmatprep.subr.bf16.mxu0 0
    %1708 = vmatpush1.bf16.xpose.msra.mxu0 0
    %1709 = vmatprep.subr.bf16.mxu0 0
    %1710 = vmatpush1.bf16.xpose.msra.mxu0 0
    %1711 = vmatprep.subr.bf16.mxu0 0
    %1712 = vmatpush1.bf16.xpose.msra.mxu0 0
    %1713 = vmatprep.mubr.bf16.mxu0 %v1352
    %1714 = vmatmul.mubr.bf16.gmra.mrb[0].mxu0 %v1351
    %v1715 = vpop.f32.mrb[0].mxu0
    %v1716 = vadd.f32 %v1675, %v1715
    %v1717 = vpop.f32.mrb[0].mxu0
    %v1718 = vpop.f32.mrb[0].mxu0
    %v1719 = vadd.f32 %v1678, %v1718
    %v1720 = vpop.f32.mrb[0].mxu0
    %1721 = vdwg.mxu0
    %1722 = vmatprep.subr.bf16.mxu0 %v1503
    %1723 = vmatpush1.bf16.xpose.msra.mxu0 %v1502
    %1724 = vmatprep.subr.bf16.mxu0 %v1519
    %1725 = vmatpush1.bf16.xpose.msra.mxu0 %v1518
    %1726 = vmatprep.subr.bf16.mxu0 0
    %1727 = vmatpush1.bf16.xpose.msra.mxu0 0
    %1728 = vmatprep.subr.bf16.mxu0 0
    %1729 = vmatpush1.bf16.xpose.msra.mxu0 0
    %1730 = vmatprep.subr.bf16.mxu0 0
    %1731 = vmatpush1.bf16.xpose.msra.mxu0 0
    %1732 = vmatprep.subr.bf16.mxu0 0
    %1733 = vmatpush1.bf16.xpose.msra.mxu0 0
    %1734 = vmatprep.subr.bf16.mxu0 0
    %1735 = vmatpush1.bf16.xpose.msra.mxu0 0
    %1736 = vmatprep.subr.bf16.mxu0 0
    %1737 = vmatpush1.bf16.xpose.msra.mxu0 0
    %1738 = vmatprep.subr.bf16.mxu0 0
    %1739 = vmatpush1.bf16.xpose.msra.mxu0 0
    %1740 = vmatprep.subr.bf16.mxu0 0
    %1741 = vmatpush1.bf16.xpose.msra.mxu0 0
    %1742 = vmatprep.subr.bf16.mxu0 0
    %1743 = vmatpush1.bf16.xpose.msra.mxu0 0
    %1744 = vmatprep.subr.bf16.mxu0 0
    %1745 = vmatpush1.bf16.xpose.msra.mxu0 0
    %1746 = vmatprep.subr.bf16.mxu0 0
    %1747 = vmatpush1.bf16.xpose.msra.mxu0 0
    %1748 = vmatprep.subr.bf16.mxu0 0
    %1749 = vmatpush1.bf16.xpose.msra.mxu0 0
    %1750 = vmatprep.subr.bf16.mxu0 0
    %1751 = vmatpush1.bf16.xpose.msra.mxu0 0
    %1752 = vmatprep.subr.bf16.mxu0 0
    %1753 = vmatpush1.bf16.xpose.msra.mxu0 0
    %1754 = vmatprep.mubr.bf16.mxu0 %v1354
    %1755 = vmatmul.mubr.bf16.gmra.mrb[0].mxu0 %v1353
    %v1756 = vpop.f32.mrb[0].mxu0
    %v1757 = vadd.f32 %v1716, %v1756
    %v1758 = vpop.f32.mrb[0].mxu0
    %v1759 = vpop.f32.mrb[0].mxu0
    %v1760 = vadd.f32 %v1719, %v1759
    %v1761 = vpop.f32.mrb[0].mxu0
    %1762 = vdwg.mxu0
    %1763 = vmatprep.subr.bf16.mxu0 %v1505
    %1764 = vmatpush1.bf16.xpose.msra.mxu0 %v1504
    %1765 = vmatprep.subr.bf16.mxu0 %v1521
    %1766 = vmatpush1.bf16.xpose.msra.mxu0 %v1520
    %1767 = vmatprep.subr.bf16.mxu0 0
    %1768 = vmatpush1.bf16.xpose.msra.mxu0 0
    %1769 = vmatprep.subr.bf16.mxu0 0
    %1770 = vmatpush1.bf16.xpose.msra.mxu0 0
    %1771 = vmatprep.subr.bf16.mxu0 0
    %1772 = vmatpush1.bf16.xpose.msra.mxu0 0
    %1773 = vmatprep.subr.bf16.mxu0 0
    %1774 = vmatpush1.bf16.xpose.msra.mxu0 0
    %1775 = vmatprep.subr.bf16.mxu0 0
    %1776 = vmatpush1.bf16.xpose.msra.mxu0 0
    %1777 = vmatprep.subr.bf16.mxu0 0
    %1778 = vmatpush1.bf16.xpose.msra.mxu0 0
    %1779 = vmatprep.subr.bf16.mxu0 0
    %1780 = vmatpush1.bf16.xpose.msra.mxu0 0
    %1781 = vmatprep.subr.bf16.mxu0 0
    %1782 = vmatpush1.bf16.xpose.msra.mxu0 0
    %1783 = vmatprep.subr.bf16.mxu0 0
    %1784 = vmatpush1.bf16.xpose.msra.mxu0 0
    %1785 = vmatprep.subr.bf16.mxu0 0
    %1786 = vmatpush1.bf16.xpose.msra.mxu0 0
    %1787 = vmatprep.subr.bf16.mxu0 0
    %1788 = vmatpush1.bf16.xpose.msra.mxu0 0
    %1789 = vmatprep.subr.bf16.mxu0 0
    %1790 = vmatpush1.bf16.xpose.msra.mxu0 0
    %1791 = vmatprep.subr.bf16.mxu0 0
    %1792 = vmatpush1.bf16.xpose.msra.mxu0 0
    %1793 = vmatprep.subr.bf16.mxu0 0
    %1794 = vmatpush1.bf16.xpose.msra.mxu0 0
    %1795 = vmatprep.mubr.bf16.mxu0 %v1356
    %1796 = vmatmul.mubr.bf16.gmra.mrb[0].mxu0 %v1355
    %v1797 = vpop.f32.mrb[0].mxu0
    %v1798 = vadd.f32 %v1757, %v1797
    %v1799 = vpop.f32.mrb[0].mxu0
    %v1800 = vpop.f32.mrb[0].mxu0
    %v1801 = vadd.f32 %v1760, %v1800
    %v1802 = vpop.f32.mrb[0].mxu0
    %1803 = vdwg.mxu0
    %1804 = vmatprep.subr.bf16.mxu0 %v1507
    %1805 = vmatpush1.bf16.xpose.msra.mxu0 %v1506
    %1806 = vmatprep.subr.bf16.mxu0 %v1523
    %1807 = vmatpush1.bf16.xpose.msra.mxu0 %v1522
    %1808 = vmatprep.subr.bf16.mxu0 0
    %1809 = vmatpush1.bf16.xpose.msra.mxu0 0
    %1810 = vmatprep.subr.bf16.mxu0 0
    %1811 = vmatpush1.bf16.xpose.msra.mxu0 0
    %1812 = vmatprep.subr.bf16.mxu0 0
    %1813 = vmatpush1.bf16.xpose.msra.mxu0 0
    %1814 = vmatprep.subr.bf16.mxu0 0
    %1815 = vmatpush1.bf16.xpose.msra.mxu0 0
    %1816 = vmatprep.subr.bf16.mxu0 0
    %1817 = vmatpush1.bf16.xpose.msra.mxu0 0
    %1818 = vmatprep.subr.bf16.mxu0 0
    %1819 = vmatpush1.bf16.xpose.msra.mxu0 0
    %1820 = vmatprep.subr.bf16.mxu0 0
    %1821 = vmatpush1.bf16.xpose.msra.mxu0 0
    %1822 = vmatprep.subr.bf16.mxu0 0
    %1823 = vmatpush1.bf16.xpose.msra.mxu0 0
    %1824 = vmatprep.subr.bf16.mxu0 0
    %1825 = vmatpush1.bf16.xpose.msra.mxu0 0
    %1826 = vmatprep.subr.bf16.mxu0 0
    %1827 = vmatpush1.bf16.xpose.msra.mxu0 0
    %1828 = vmatprep.subr.bf16.mxu0 0
    %1829 = vmatpush1.bf16.xpose.msra.mxu0 0
    %1830 = vmatprep.subr.bf16.mxu0 0
    %1831 = vmatpush1.bf16.xpose.msra.mxu0 0
    %1832 = vmatprep.subr.bf16.mxu0 0
    %1833 = vmatpush1.bf16.xpose.msra.mxu0 0
    %1834 = vmatprep.subr.bf16.mxu0 0
    %1835 = vmatpush1.bf16.xpose.msra.mxu0 0
    %1836 = vmatprep.mubr.bf16.mxu0 %v1358
    %1837 = vmatmul.mubr.bf16.gmra.mrb[0].mxu0 %v1357
    %v1838 = vpop.f32.mrb[0].mxu0
    %v1839 = vadd.f32 %v1798, %v1838
    %v1840 = vpop.f32.mrb[0].mxu0
    %v1841 = vpop.f32.mrb[0].mxu0
    %v1842 = vadd.f32 %v1801, %v1841
    %v1843 = vpop.f32.mrb[0].mxu0
    %1844 = vdwg.mxu0
    %1845 = vmatprep.subr.bf16.mxu0 %v1509
    %1846 = vmatpush1.bf16.xpose.msra.mxu0 %v1508
    %1847 = vmatprep.subr.bf16.mxu0 %v1525
    %1848 = vmatpush1.bf16.xpose.msra.mxu0 %v1524
    %1849 = vmatprep.subr.bf16.mxu0 0
    %1850 = vmatpush1.bf16.xpose.msra.mxu0 0
    %1851 = vmatprep.subr.bf16.mxu0 0
    %1852 = vmatpush1.bf16.xpose.msra.mxu0 0
    %1853 = vmatprep.subr.bf16.mxu0 0
    %1854 = vmatpush1.bf16.xpose.msra.mxu0 0
    %1855 = vmatprep.subr.bf16.mxu0 0
    %1856 = vmatpush1.bf16.xpose.msra.mxu0 0
    %1857 = vmatprep.subr.bf16.mxu0 0
    %1858 = vmatpush1.bf16.xpose.msra.mxu0 0
    %1859 = vmatprep.subr.bf16.mxu0 0
    %1860 = vmatpush1.bf16.xpose.msra.mxu0 0
    %1861 = vmatprep.subr.bf16.mxu0 0
    %1862 = vmatpush1.bf16.xpose.msra.mxu0 0
    %1863 = vmatprep.subr.bf16.mxu0 0
    %1864 = vmatpush1.bf16.xpose.msra.mxu0 0
    %1865 = vmatprep.subr.bf16.mxu0 0
    %1866 = vmatpush1.bf16.xpose.msra.mxu0 0
    %1867 = vmatprep.subr.bf16.mxu0 0
    %1868 = vmatpush1.bf16.xpose.msra.mxu0 0
    %1869 = vmatprep.subr.bf16.mxu0 0
    %1870 = vmatpush1.bf16.xpose.msra.mxu0 0
    %1871 = vmatprep.subr.bf16.mxu0 0
    %1872 = vmatpush1.bf16.xpose.msra.mxu0 0
    %1873 = vmatprep.subr.bf16.mxu0 0
    %1874 = vmatpush1.bf16.xpose.msra.mxu0 0
    %1875 = vmatprep.subr.bf16.mxu0 0
    %1876 = vmatpush1.bf16.xpose.msra.mxu0 0
    %1877 = vmatprep.mubr.bf16.mxu0 %v1360
    %1878 = vmatmul.mubr.bf16.gmra.mrb[0].mxu0 %v1359
    %v1879 = vpop.f32.mrb[0].mxu0
    %v1880 = vadd.f32 %v1839, %v1879
    %v1881 = vpop.f32.mrb[0].mxu0
    %v1882 = vpop.f32.mrb[0].mxu0
    %v1883 = vadd.f32 %v1842, %v1882
    %v1884 = vpop.f32.mrb[0].mxu0
    %1885 = vdwg.mxu0
    %v1886 = vadd.f32 %v687, %v1880
    %v1887 = vadd.f32 %v688, %v1883
    %v1888 = vld [vmem:[#allocation2 + $0x84] sm:$0x1]
    %v1889 = vld [vmem:[#allocation2 + $0x85] sm:$0x1]
    %v1890 = vsel %vm85, %v1886, 0.0
    %1891 = vadd.xlane.f32.xlu0 %v1890
    %v1892 = vpop.xlane.xlu0 %1891
    %v1893 = vsel %vm85, %v1887, 0.0
    %1894 = vadd.xlane.f32.xlu0 %v1893
    %v1895 = vpop.xlane.xlu0 %1894
    %v1896 = vmul.f32 %v1892, %v656
    %v1897 = vmul.f32 %v1895, %v656
    %v1898 = vsub.f32 %v1886, %v1896
    %v1899 = vsub.f32 %v1887, %v1897
    %v1900 = vmul.f32 %v1898, %v1898
    %v1901 = vmul.f32 %v1899, %v1899
    %v1902 = vsel %vm85, %v1900, 0.0
    %1903 = vadd.xlane.f32.xlu0 %v1902
    %v1904 = vpop.xlane.xlu0 %1903
    %v1905 = vsel %vm85, %v1901, 0.0
    %1906 = vadd.xlane.f32.xlu0 %v1905
    %v1907 = vpop.xlane.xlu0 %1906
    %v1908 = vmul.f32 %v1904, %v656
    %v1909 = vmul.f32 %v1907, %v656
    %v1910 = vadd.f32 %v1908, 1e-05
    %v1911 = vadd.f32 %v1909, 1e-05
    %v1912 = vrsqrt.pop %v1910
    %v1913 = vrsqrt.pop %v1911
    %v1914 = vmul.f32 %v1898, %v1912
    %v1915 = vmul.f32 %v1899, %v1913
    %v1916 = vlaneseq
    %v1917 = vshrl.u32 %v1916, 7
    %v1918 = vsub.s32 0, %v1917
    %v1919 = vrot.slane %v1888, %v1918
    %v1920 = vmul.f32 %v1914, %v1919
    %v1921 = vmul.f32 %v1915, %v1919
    %v1922 = vlaneseq
    %v1923 = vshrl.u32 %v1922, 7
    %v1924 = vsub.s32 0, %v1923
    %v1925 = vrot.slane %v1889, %v1924
    %v1926 = vadd.f32 %v1920, %v1925
    %v1927 = vadd.f32 %v1921, %v1925
    %v1928 = vld [vmem:[#allocation2 + $0x60] sm:$0xff]
    %v1929 = vld [vmem:[#allocation2 + $0x68] sm:$0xff]
    %v1930 = vld [vmem:[#allocation2 + $0x70] sm:$0xff]
    %v1931 = vld [vmem:[#allocation2 + $0x78] sm:$0xff]
    %v1932 = vld [vmem:[#allocation2 + $0x86] sm:$0x1]
    %v1933 = vlaneseq
    %v1934 = vshrl.u32 %v1933, 7
    %v1935 = vsub.s32 0, %v1934
    %v1936 = vrot.slane %v1932, %v1935
    %v1938 = vsel %vm85, %v1926, 0
    %v1941 = vsel %vm85, %v1927, 0
    %1943 = vmatprep.subr.mxu0 0.0
    %1944 = vmatpush1.msra.mxu0 %v1928
    %1945 = vmatprep.subr.mxu0 0.0
    %1946 = vmatpush1.msra.mxu0 %v1929
    %1947 = vmatprep.subr.mxu0 0.0
    %1948 = vmatpush1.msra.mxu0 %v1930
    %1949 = vmatprep.subr.mxu0 0.0
    %1950 = vmatpush1.msra.mxu0 %v1931
    %1951 = vmatprep.subr.mxu0 0.0
    %1952 = vmatpush1.msra.mxu0 0.0
    %1953 = vmatprep.subr.mxu0 0.0
    %1954 = vmatpush1.msra.mxu0 0.0
    %1955 = vmatprep.subr.mxu0 0.0
    %1956 = vmatpush1.msra.mxu0 0.0
    %1957 = vmatprep.subr.mxu0 0.0
    %1958 = vmatpush1.msra.mxu0 0.0
    %1959 = vmatprep.subr.mxu0 0.0
    %1960 = vmatpush1.msra.mxu0 0.0
    %1961 = vmatprep.subr.mxu0 0.0
    %1962 = vmatpush1.msra.mxu0 0.0
    %1963 = vmatprep.subr.mxu0 0.0
    %1964 = vmatpush1.msra.mxu0 0.0
    %1965 = vmatprep.subr.mxu0 0.0
    %1966 = vmatpush1.msra.mxu0 0.0
    %1967 = vmatprep.subr.mxu0 0.0
    %1968 = vmatpush1.msra.mxu0 0.0
    %1969 = vmatprep.subr.mxu0 0.0
    %1970 = vmatpush1.msra.mxu0 0.0
    %1971 = vmatprep.subr.mxu0 0.0
    %1972 = vmatpush1.msra.mxu0 0.0
    %1973 = vmatprep.subr.mxu0 0.0
    %1974 = vmatpush1.msra.mxu0 0.0
    %1975 = vmatprep.subr.mxu0 0.0
    %1976 = vmatpush1.msra.mxu0 0.0
    %1977 = vmatprep.subr.mxu0 0.0
    %1978 = vmatpush1.msra.mxu0 0.0
    %1979 = vmatprep.subr.mxu0 0.0
    %1980 = vmatpush1.msra.mxu0 0.0
    %1981 = vmatprep.subr.mxu0 0.0
    %1982 = vmatpush1.msra.mxu0 0.0
    %1983 = vmatprep.subr.mxu0 0.0
    %1984 = vmatpush1.msra.mxu0 0.0
    %1985 = vmatprep.subr.mxu0 0.0
    %1986 = vmatpush1.msra.mxu0 0.0
    %1987 = vmatprep.subr.mxu0 0.0
    %1988 = vmatpush1.msra.mxu0 0.0
    %1989 = vmatprep.subr.mxu0 0.0
    %1990 = vmatpush1.msra.mxu0 0.0
    %1991 = vmatprep.subr.mxu0 0.0
    %1992 = vmatpush1.msra.mxu0 0.0
    %1993 = vmatprep.subr.mxu0 0.0
    %1994 = vmatpush1.msra.mxu0 0.0
    %1995 = vmatprep.subr.mxu0 0.0
    %1996 = vmatpush1.msra.mxu0 0.0
    %1997 = vmatprep.subr.mxu0 0.0
    %1998 = vmatpush1.msra.mxu0 0.0
    %1999 = vmatprep.subr.mxu0 0.0
    %2000 = vmatpush1.msra.mxu0 0.0
    %2001 = vmatprep.subr.mxu0 0.0
    %2002 = vmatpush1.msra.mxu0 0.0
    %2003 = vmatprep.subr.mxu0 0.0
    %2004 = vmatpush1.msra.mxu0 0.0
    %2005 = vmatprep.subr.mxu0 0.0
    %2006 = vmatpush1.msra.mxu0 0.0
    %2007 = vmatprep.mubr.f32.mxu0 0.0
    %2008 = vmatmul.mubr.f32.gmra.mrb[0].mxu0 %v1938
    %v2009 = vpop.f32.mrb[0].mxu0
    %v2010 = vadd.f32 %v1936, %v2009
    %v2011 = vpop.f32.mrb[0].mxu0
    %2012 = vmatprep.mubr.f32.mxu0 0.0
    %2013 = vmatmul.mubr.f32.gmra.mrb[0].mxu0 %v1941
    %v2014 = vpop.f32.mrb[0].mxu0
    %v2015 = vadd.f32 %v1936, %v2014
    %v2016 = vpop.f32.mrb[0].mxu0
    %2017 = vdwg.mxu0
    %2018 = vst [vmem:[%s6] sm:$0xff] %v2010
    %2019 = vst [vmem:[%s6 + $0x8] sm:$0xff] %v2015
    // Predicated region
    $region38: #{tinygpt_forward.1} parent=1 // pred_check
      _
    $region39: #{tinygpt_forward.1} parent=1 // pred_check_branch
      %2021 = sbr.rel (0) target = $region41
    $region40: #{tinygpt_forward.1} parent=1 // pred_region
      _
    $region41: #{tinygpt_forward.1} parent=1 // pred_fallthru
      _
    // Predicated region
    $region42: #{tinygpt_forward.1} parent=1 // pred_check
      _
    $region43: #{tinygpt_forward.1} parent=1 // pred_check_branch
      %2023 = sbr.rel (0) target = $region45
    $region44: #{tinygpt_forward.1} parent=1 // pred_region
      _
    $region45: #{tinygpt_forward.1} parent=1 // pred_fallthru
      _
    %2024 = vsyncpa [#allocation3], 1
    %2025 = vsyncpa [#allocation5], 1

</llo_original>
